<compile_context>
chip_gen: v7x
topology: tpu7x:2x2x1
jax: 0.10.0
libtpu: 0.0.40
codegen_flags: <defaults>
</compile_context>

<pallas_src>
import math

import jax
import jax.numpy as jnp
from jax.experimental import pallas as pl
from jax.experimental.pallas import tpu as pltpu

# Original / padded layer dims (in_features, out_features).
# Only the small middle dims (64, 16) are padded to 128; 784/256 stay native.
_DIMS   = [(784, 256), (256, 64), (64, 16), (16, 64), (64, 256), (256, 784)]
_PADDED = [(784, 256), (256, 128), (128, 128), (128, 128), (128, 256), (256, 784)]
_IN_DIM = 784


def _round_up(x, m):
    return (x + m - 1) // m * m


# ----------------------------------------------------------------------------
# Kernel: full 6-layer forward for one (TB, 784) batch tile.
# ----------------------------------------------------------------------------
def _autoencoder_kernel(
    x_ref,
    w1_ref, b1_ref, w2_ref, b2_ref, w3_ref, b3_ref,   # encoder
    w4_ref, b4_ref, w5_ref, b5_ref, w6_ref, b6_ref,   # decoder
    o_ref,
):
    def dense_relu(h_bf16, w_ref, b_ref):
        # bf16 x bf16 on the MXU, f32 accumulate; bias add + ReLU in f32.
        y = jnp.dot(h_bf16, w_ref[...], preferred_element_type=jnp.float32)
        y = y + b_ref[...]
        return jnp.maximum(y, 0.0).astype(jnp.bfloat16)

    h = x_ref[...]                      # already bf16
    h = dense_relu(h, w1_ref, b1_ref)
    h = dense_relu(h, w2_ref, b2_ref)
    h = dense_relu(h, w3_ref, b3_ref)
    h = dense_relu(h, w4_ref, b4_ref)
    h = dense_relu(h, w5_ref, b5_ref)

    y = jnp.dot(h, w6_ref[...], preferred_element_type=jnp.float32) + b6_ref[...]
    # sigmoid(y) = 1 / (1 + exp(-y)); exact reciprocal (DMA-bound, EUP has slack).
    o_ref[...] = pl.reciprocal(1.0 + jnp.exp(-y), approx=False).astype(o_ref.dtype)


# ----------------------------------------------------------------------------
# Tile heuristic
# ----------------------------------------------------------------------------
def _pick_tiles(B):
    rows = _round_up(max(B, 1), 8)
    # Target 512-row tiles (amortizes per-step overhead, drives the 256-wide
    # MXU), but cap at ~half the batch so the parallel grid axis has >=2 steps
    # and both v7x TensorCores get work.  Always a multiple of 8 sublanes.
    half = _round_up((rows + 1) // 2, 8)
    tb = max(8, min(512, half))
    pB = _round_up(rows, tb)
    return tb, pB


# ----------------------------------------------------------------------------
# Wrapper
# ----------------------------------------------------------------------------
def autoencoder_forward(x_nchw, prep):
    """Forward pass matching Autoencoder.forward.

    x_nchw: (B, 1, 28, 28) float32
    prep:   prepared (padded, bf16-weight) params from prepare_params()
    returns: (B, 1, 28, 28) float32
    """
    B = x_nchw.shape[0]
    # == torch x.view(bs, -1); cast to bf16 (kernel feeds the MXU in bf16
    # anyway) and, if needed, pad batch rows — cast+pad fuse into one XLA op.
    x_flat = x_nchw.reshape(B, _IN_DIM).astype(jnp.bfloat16)

    TB, pB = _pick_tiles(B)
    if pB != B:
        x_flat = jnp.pad(x_flat, ((0, pB - B), (0, 0)))

    flat_args = [
        x_flat,
        prep["w1"], prep["b1"], prep["w2"], prep["b2"], prep["w3"], prep["b3"],
        prep["w4"], prep["b4"], prep["w5"], prep["b5"], prep["w6"], prep["b6"],
    ]

    # x/out are tiled over the batch grid axis (784 = full array dim, allowed);
    # weights/biases are full blocks at a constant block index -> VMEM-resident.
    in_specs = [pl.BlockSpec((TB, _IN_DIM), lambda i: (i, 0))]
    for a in flat_args[1:]:
        in_specs.append(pl.BlockSpec(a.shape, lambda i: (0, 0)))
    out_specs = pl.BlockSpec((TB, _IN_DIM), lambda i: (i, 0))

    weight_bytes = sum(
        int(prep[f"w{i}"].size) * 2 + int(prep[f"b{i}"].size) * 4
        for i in range(1, 7)
    )
    cost = pl.CostEstimate(
        flops=2 * pB * sum(fi * fo for fi, fo in _PADDED),
        transcendentals=pB * _IN_DIM,
        bytes_accessed=pB * _IN_DIM * (2 + 4) + weight_bytes,
    )

    out_flat = pl.pallas_call(
        _autoencoder_kernel,
        out_shape=jax.ShapeDtypeStruct((pB, _IN_DIM), jnp.float32),
        grid=(pB // TB,),
        in_specs=in_specs,
        out_specs=out_specs,
        compiler_params=pltpu.CompilerParams(
            dimension_semantics=("parallel",)),
        cost_estimate=cost,
    )(*flat_args)

    # Drop batch padding and restore NCHW (== torch x.view(-1, 1, 28, 28)).
    if pB != B:
        out_flat = out_flat[:B]
    return out_flat.reshape(B, 1, 28, 28)


# ----------------------------------------------------------------------------
# Parameter init mimicking nn.Linear defaults
# (U[-1/sqrt(fan_in), 1/sqrt(fan_in)] for W and b), stored (in, out), f32.
# y = x @ W + b is mathematically identical to PyTorch's y = x @ W_pt.T + b.
# ----------------------------------------------------------------------------
def init_params(key):
    params = {}
    for i, (fan_in, fan_out) in enumerate(_DIMS, start=1):
        key, kw, kb = jax.random.split(key, 3)
        bound = 1.0 / math.sqrt(fan_in)
        params[f"w{i}"] = jax.random.uniform(
            kw, (fan_in, fan_out), jnp.float32, -bound, bound)
        params[f"b{i}"] = jax.random.uniform(
            kb, (1, fan_out), jnp.float32, -bound, bound)
    return params


def prepare_params(params):
    """Zero-pad the small middle feature dims to 128 and cast weights to bf16."""
    prep = {}
    for i, ((fi, fo), (pfi, pfo)) in enumerate(zip(_DIMS, _PADDED), start=1):
        w = jnp.pad(params[f"w{i}"], ((0, pfi - fi), (0, pfo - fo)))
        b = jnp.pad(params[f"b{i}"], ((0, 0), (0, pfo - fo)))
        prep[f"w{i}"] = w.astype(jnp.bfloat16)
        prep[f"b{i}"] = b.astype(jnp.float32)
    return prep


# ----------------------------------------------------------------------------
# Pure-JAX reference mirroring the kernel's bf16/f32 math for a tight check.
# ----------------------------------------------------------------------------
def _ref_forward(x_nchw, prep):
    B = x_nchw.shape[0]
    h = x_nchw.reshape(B, -1).astype(jnp.bfloat16)

    def dense_relu(h, w, b):
        y = jnp.dot(h.astype(jnp.bfloat16), w,
                    preferred_element_type=jnp.float32) + b
        return jnp.maximum(y, 0.0)

    h = dense_relu(h, prep["w1"], prep["b1"])
    h = dense_relu(h, prep["w2"], prep["b2"])
    h = dense_relu(h, prep["w3"], prep["b3"])
    h = dense_relu(h, prep["w4"], prep["b4"])
    h = dense_relu(h, prep["w5"], prep["b5"])
    y = jnp.dot(h.astype(jnp.bfloat16), prep["w6"],
                preferred_element_type=jnp.float32) + prep["b6"]
    out = 1.0 / (1.0 + jnp.exp(-y))
    return out.reshape(B, 1, 28, 28)


if __name__ == "__main__":
    key = jax.random.PRNGKey(0)
    key, kx = jax.random.split(key)

    B = 2
    x = jax.random.normal(kx, (B, 1, 28, 28), jnp.float32)
    params = init_params(key)
    prep = prepare_params(params)

    fwd = jax.jit(autoencoder_forward)
    out = fwd(x, prep)
    out = jax.block_until_ready(out)

    assert out.shape == (B, 1, 28, 28), out.shape
    ref = _ref_forward(x, prep)
    assert jnp.allclose(out, ref, atol=5e-3, rtol=0.0), (
        "mismatch vs reference: max abs err = %e" % float(jnp.max(jnp.abs(out - ref))))

    print("KERNEL_OK")
</pallas_src>

<mosaic_0001>
module attributes {stable_mosaic.version = 11 : i64} {
  func.func @_autoencoder_kernel(%arg0: i32, %arg1: memref<8x784xbf16, #tpu.memory_space<vmem>>, %arg2: memref<784x256xbf16, #tpu.memory_space<vmem>>, %arg3: memref<1x256xf32, #tpu.memory_space<vmem>>, %arg4: memref<256x128xbf16, #tpu.memory_space<vmem>>, %arg5: memref<1x128xf32, #tpu.memory_space<vmem>>, %arg6: memref<128x128xbf16, #tpu.memory_space<vmem>>, %arg7: memref<1x128xf32, #tpu.memory_space<vmem>>, %arg8: memref<128x128xbf16, #tpu.memory_space<vmem>>, %arg9: memref<1x128xf32, #tpu.memory_space<vmem>>, %arg10: memref<128x256xbf16, #tpu.memory_space<vmem>>, %arg11: memref<1x256xf32, #tpu.memory_space<vmem>>, %arg12: memref<256x784xbf16, #tpu.memory_space<vmem>>, %arg13: memref<1x784xf32, #tpu.memory_space<vmem>>, %arg14: memref<8x784xf32, #tpu.memory_space<vmem>>) attributes {dimension_semantics = [#tpu.dimension_semantics<parallel>], iteration_bounds = array<i64: 1>, scalar_prefetch = 0 : i64, scratch_operands = 0 : i64, tpu.core_type = #tpu.core_type<tc>, window_params = [{transform_indices = @transform_0, window_bounds = array<i64: 8, 784>}, {pipeline_mode = #tpu.pipeline_mode<synchronous>, transform_indices = @transform_1, window_bounds = array<i64: 784, 256>}, {pipeline_mode = #tpu.pipeline_mode<synchronous>, transform_indices = @transform_2, window_bounds = array<i64: 1, 256>}, {pipeline_mode = #tpu.pipeline_mode<synchronous>, transform_indices = @transform_3, window_bounds = array<i64: 256, 128>}, {pipeline_mode = #tpu.pipeline_mode<synchronous>, transform_indices = @transform_4, window_bounds = array<i64: 1, 128>}, {pipeline_mode = #tpu.pipeline_mode<synchronous>, transform_indices = @transform_5, window_bounds = array<i64: 128, 128>}, {pipeline_mode = #tpu.pipeline_mode<synchronous>, transform_indices = @transform_6, window_bounds = array<i64: 1, 128>}, {pipeline_mode = #tpu.pipeline_mode<synchronous>, transform_indices = @transform_7, window_bounds = array<i64: 128, 128>}, {pipeline_mode = #tpu.pipeline_mode<synchronous>, transform_indices = @transform_8, window_bounds = array<i64: 1, 128>}, {pipeline_mode = #tpu.pipeline_mode<synchronous>, transform_indices = @transform_9, window_bounds = array<i64: 128, 256>}, {pipeline_mode = #tpu.pipeline_mode<synchronous>, transform_indices = @transform_10, window_bounds = array<i64: 1, 256>}, {pipeline_mode = #tpu.pipeline_mode<synchronous>, transform_indices = @transform_11, window_bounds = array<i64: 256, 784>}, {pipeline_mode = #tpu.pipeline_mode<synchronous>, transform_indices = @transform_12, window_bounds = array<i64: 1, 784>}, {transform_indices = @transform_13, window_bounds = array<i64: 8, 784>}]} {
    %c0 = arith.constant 0 : index
    %c0_0 = arith.constant 0 : index
    %0 = vector.load %arg1[%c0, %c0_0] : memref<8x784xbf16, #tpu.memory_space<vmem>>, vector<8x784xbf16>
    %c0_1 = arith.constant 0 : index
    %c0_2 = arith.constant 0 : index
    %1 = vector.load %arg2[%c0_1, %c0_2] : memref<784x256xbf16, #tpu.memory_space<vmem>>, vector<784x256xbf16>
    %cst = arith.constant dense<0.000000e+00> : vector<8x256xf32>
    %2 = tpu.matmul %0, %1, %cst {dimension_numbers = #tpu.dot_dimension_numbers<[1], [0], [0], [1], [0, 0, 1, 1], [], []>} : vector<8x784xbf16>, vector<784x256xbf16>, vector<8x256xf32> -> vector<8x256xf32>
    %c0_3 = arith.constant 0 : index
    %c0_4 = arith.constant 0 : index
    %3 = vector.load %arg3[%c0_3, %c0_4] : memref<1x256xf32, #tpu.memory_space<vmem>>, vector<1x256xf32>
    %4 = vector.broadcast %3 : vector<1x256xf32> to vector<8x256xf32>
    %5 = arith.addf %2, %4 : vector<8x256xf32>
    %cst_5 = arith.constant 0.000000e+00 : f32
    %6 = vector.broadcast %cst_5 : f32 to vector<8x256xf32>
    %7 = arith.maximumf %5, %6 : vector<8x256xf32>
    %8 = arith.truncf %7 : vector<8x256xf32> to vector<8x256xbf16>
    %c0_6 = arith.constant 0 : index
    %c0_7 = arith.constant 0 : index
    %9 = vector.load %arg4[%c0_6, %c0_7] : memref<256x128xbf16, #tpu.memory_space<vmem>>, vector<256x128xbf16>
    %cst_8 = arith.constant dense<0.000000e+00> : vector<8x128xf32>
    %10 = tpu.matmul %8, %9, %cst_8 {dimension_numbers = #tpu.dot_dimension_numbers<[1], [0], [0], [1], [0, 0, 1, 1], [], []>} : vector<8x256xbf16>, vector<256x128xbf16>, vector<8x128xf32> -> vector<8x128xf32>
    %c0_9 = arith.constant 0 : index
    %c0_10 = arith.constant 0 : index
    %11 = vector.load %arg5[%c0_9, %c0_10] : memref<1x128xf32, #tpu.memory_space<vmem>>, vector<1x128xf32>
    %12 = vector.broadcast %11 : vector<1x128xf32> to vector<8x128xf32>
    %13 = arith.addf %10, %12 : vector<8x128xf32>
    %cst_11 = arith.constant 0.000000e+00 : f32
    %14 = vector.broadcast %cst_11 : f32 to vector<8x128xf32>
    %15 = arith.maximumf %13, %14 : vector<8x128xf32>
    %16 = arith.truncf %15 : vector<8x128xf32> to vector<8x128xbf16>
    %c0_12 = arith.constant 0 : index
    %c0_13 = arith.constant 0 : index
    %17 = vector.load %arg6[%c0_12, %c0_13] : memref<128x128xbf16, #tpu.memory_space<vmem>>, vector<128x128xbf16>
    %cst_14 = arith.constant dense<0.000000e+00> : vector<8x128xf32>
    %18 = tpu.matmul %16, %17, %cst_14 {dimension_numbers = #tpu.dot_dimension_numbers<[1], [0], [0], [1], [0, 0, 1, 1], [], []>} : vector<8x128xbf16>, vector<128x128xbf16>, vector<8x128xf32> -> vector<8x128xf32>
    %c0_15 = arith.constant 0 : index
    %c0_16 = arith.constant 0 : index
    %19 = vector.load %arg7[%c0_15, %c0_16] : memref<1x128xf32, #tpu.memory_space<vmem>>, vector<1x128xf32>
    %20 = vector.broadcast %19 : vector<1x128xf32> to vector<8x128xf32>
    %21 = arith.addf %18, %20 : vector<8x128xf32>
    %cst_17 = arith.constant 0.000000e+00 : f32
    %22 = vector.broadcast %cst_17 : f32 to vector<8x128xf32>
    %23 = arith.maximumf %21, %22 : vector<8x128xf32>
    %24 = arith.truncf %23 : vector<8x128xf32> to vector<8x128xbf16>
    %c0_18 = arith.constant 0 : index
    %c0_19 = arith.constant 0 : index
    %25 = vector.load %arg8[%c0_18, %c0_19] : memref<128x128xbf16, #tpu.memory_space<vmem>>, vector<128x128xbf16>
    %cst_20 = arith.constant dense<0.000000e+00> : vector<8x128xf32>
    %26 = tpu.matmul %24, %25, %cst_20 {dimension_numbers = #tpu.dot_dimension_numbers<[1], [0], [0], [1], [0, 0, 1, 1], [], []>} : vector<8x128xbf16>, vector<128x128xbf16>, vector<8x128xf32> -> vector<8x128xf32>
    %c0_21 = arith.constant 0 : index
    %c0_22 = arith.constant 0 : index
    %27 = vector.load %arg9[%c0_21, %c0_22] : memref<1x128xf32, #tpu.memory_space<vmem>>, vector<1x128xf32>
    %28 = vector.broadcast %27 : vector<1x128xf32> to vector<8x128xf32>
    %29 = arith.addf %26, %28 : vector<8x128xf32>
    %cst_23 = arith.constant 0.000000e+00 : f32
    %30 = vector.broadcast %cst_23 : f32 to vector<8x128xf32>
    %31 = arith.maximumf %29, %30 : vector<8x128xf32>
    %32 = arith.truncf %31 : vector<8x128xf32> to vector<8x128xbf16>
    %c0_24 = arith.constant 0 : index
    %c0_25 = arith.constant 0 : index
    %33 = vector.load %arg10[%c0_24, %c0_25] : memref<128x256xbf16, #tpu.memory_space<vmem>>, vector<128x256xbf16>
    %cst_26 = arith.constant dense<0.000000e+00> : vector<8x256xf32>
    %34 = tpu.matmul %32, %33, %cst_26 {dimension_numbers = #tpu.dot_dimension_numbers<[1], [0], [0], [1], [0, 0, 1, 1], [], []>} : vector<8x128xbf16>, vector<128x256xbf16>, vector<8x256xf32> -> vector<8x256xf32>
    %c0_27 = arith.constant 0 : index
    %c0_28 = arith.constant 0 : index
    %35 = vector.load %arg11[%c0_27, %c0_28] : memref<1x256xf32, #tpu.memory_space<vmem>>, vector<1x256xf32>
    %36 = vector.broadcast %35 : vector<1x256xf32> to vector<8x256xf32>
    %37 = arith.addf %34, %36 : vector<8x256xf32>
    %cst_29 = arith.constant 0.000000e+00 : f32
    %38 = vector.broadcast %cst_29 : f32 to vector<8x256xf32>
    %39 = arith.maximumf %37, %38 : vector<8x256xf32>
    %40 = arith.truncf %39 : vector<8x256xf32> to vector<8x256xbf16>
    %c0_30 = arith.constant 0 : index
    %c0_31 = arith.constant 0 : index
    %41 = vector.load %arg12[%c0_30, %c0_31] : memref<256x784xbf16, #tpu.memory_space<vmem>>, vector<256x784xbf16>
    %cst_32 = arith.constant dense<0.000000e+00> : vector<8x784xf32>
    %42 = tpu.matmul %40, %41, %cst_32 {dimension_numbers = #tpu.dot_dimension_numbers<[1], [0], [0], [1], [0, 0, 1, 1], [], []>} : vector<8x256xbf16>, vector<256x784xbf16>, vector<8x784xf32> -> vector<8x784xf32>
    %c0_33 = arith.constant 0 : index
    %c0_34 = arith.constant 0 : index
    %43 = vector.load %arg13[%c0_33, %c0_34] : memref<1x784xf32, #tpu.memory_space<vmem>>, vector<1x784xf32>
    %44 = vector.broadcast %43 : vector<1x784xf32> to vector<8x784xf32>
    %45 = arith.addf %42, %44 : vector<8x784xf32>
    %cst_35 = arith.constant 0.000000e+00 : f32
    %46 = vector.broadcast %cst_35 : f32 to vector<8x784xf32>
    %47 = arith.subf %46, %45 : vector<8x784xf32>
    %48 = math.exp %47 : vector<8x784xf32>
    %cst_36 = arith.constant 1.000000e+00 : f32
    %49 = vector.broadcast %cst_36 : f32 to vector<8x784xf32>
    %50 = arith.addf %49, %48 : vector<8x784xf32>
    %51 = tpu.reciprocal %50 : vector<8x784xf32> -> vector<8x784xf32>
    %c0_37 = arith.constant 0 : index
    %c0_38 = arith.constant 0 : index
    %52 = vector.load %arg14[%c0_37, %c0_38] : memref<8x784xf32, #tpu.memory_space<vmem>>, vector<8x784xf32>
    tpu.vector_store %arg14[%c0_37, %c0_38], %51 {strides = array<i32>} : memref<8x784xf32, #tpu.memory_space<vmem>>, vector<8x784xf32>,
    return
  }
  func.func @transform_0(%arg0: i32) -> (i32, i32) {
    %c0_i32 = arith.constant 0 : i32
    %c0_i32_0 = arith.constant 0 : i32
    return %arg0, %c0_i32 : i32, i32
  }
  func.func @transform_1(%arg0: i32) -> (i32, i32) {
    %c0_i32 = arith.constant 0 : i32
    %c0_i32_0 = arith.constant 0 : i32
    %c0_i32_1 = arith.constant 0 : i32
    return %c0_i32, %c0_i32_0 : i32, i32
  }
  func.func @transform_2(%arg0: i32) -> (i32, i32) {
    %c0_i32 = arith.constant 0 : i32
    %c0_i32_0 = arith.constant 0 : i32
    %c0_i32_1 = arith.constant 0 : i32
    return %c0_i32, %c0_i32_0 : i32, i32
  }
  func.func @transform_3(%arg0: i32) -> (i32, i32) {
    %c0_i32 = arith.constant 0 : i32
    %c0_i32_0 = arith.constant 0 : i32
    %c0_i32_1 = arith.constant 0 : i32
    return %c0_i32, %c0_i32_0 : i32, i32
  }
  func.func @transform_4(%arg0: i32) -> (i32, i32) {
    %c0_i32 = arith.constant 0 : i32
    %c0_i32_0 = arith.constant 0 : i32
    %c0_i32_1 = arith.constant 0 : i32
    return %c0_i32, %c0_i32_0 : i32, i32
  }
  func.func @transform_5(%arg0: i32) -> (i32, i32) {
    %c0_i32 = arith.constant 0 : i32
    %c0_i32_0 = arith.constant 0 : i32
    %c0_i32_1 = arith.constant 0 : i32
    return %c0_i32, %c0_i32_0 : i32, i32
  }
  func.func @transform_6(%arg0: i32) -> (i32, i32) {
    %c0_i32 = arith.constant 0 : i32
    %c0_i32_0 = arith.constant 0 : i32
    %c0_i32_1 = arith.constant 0 : i32
    return %c0_i32, %c0_i32_0 : i32, i32
  }
  func.func @transform_7(%arg0: i32) -> (i32, i32) {
    %c0_i32 = arith.constant 0 : i32
    %c0_i32_0 = arith.constant 0 : i32
    %c0_i32_1 = arith.constant 0 : i32
    return %c0_i32, %c0_i32_0 : i32, i32
  }
  func.func @transform_8(%arg0: i32) -> (i32, i32) {
    %c0_i32 = arith.constant 0 : i32
    %c0_i32_0 = arith.constant 0 : i32
    %c0_i32_1 = arith.constant 0 : i32
    return %c0_i32, %c0_i32_0 : i32, i32
  }
  func.func @transform_9(%arg0: i32) -> (i32, i32) {
    %c0_i32 = arith.constant 0 : i32
    %c0_i32_0 = arith.constant 0 : i32
    %c0_i32_1 = arith.constant 0 : i32
    return %c0_i32, %c0_i32_0 : i32, i32
  }
  func.func @transform_10(%arg0: i32) -> (i32, i32) {
    %c0_i32 = arith.constant 0 : i32
    %c0_i32_0 = arith.constant 0 : i32
    %c0_i32_1 = arith.constant 0 : i32
    return %c0_i32, %c0_i32_0 : i32, i32
  }
  func.func @transform_11(%arg0: i32) -> (i32, i32) {
    %c0_i32 = arith.constant 0 : i32
    %c0_i32_0 = arith.constant 0 : i32
    %c0_i32_1 = arith.constant 0 : i32
    return %c0_i32, %c0_i32_0 : i32, i32
  }
  func.func @transform_12(%arg0: i32) -> (i32, i32) {
    %c0_i32 = arith.constant 0 : i32
    %c0_i32_0 = arith.constant 0 : i32
    %c0_i32_1 = arith.constant 0 : i32
    return %c0_i32, %c0_i32_0 : i32, i32
  }
  func.func @transform_13(%arg0: i32) -> (i32, i32) {
    %c0_i32 = arith.constant 0 : i32
    %c0_i32_0 = arith.constant 0 : i32
    return %arg0, %c0_i32 : i32, i32
  }
}

</mosaic_0001>

<llo_original>
// kernel: autoencoder_forward.1
$region0: #{autoencoder_forward.1}
  #allocation0 [shape = 'u32[]', space=smem, size = 0x4, offset = 0x4, fixed_abs, tag = 'smem constant byte address 0x4 - core index']
  #allocation1 [shape = 'u32[144,128]{1,0:T(1,128)}', space=vmem, size = 0x12000, scoped, tag = 'internal scratch']
  %s0 = inlined_call_operand.vmem [shape: bf16[8,784], index: 0, kind: input, shape index: {}]
  %s1 = inlined_call_operand.vmem [shape: bf16[784,256], index: 1, kind: input, shape index: {}]
  %s2 = inlined_call_operand.vmem [shape: f32[1,256], index: 2, kind: input, shape index: {}]
  %s3 = inlined_call_operand.vmem [shape: bf16[256,128], index: 3, kind: input, shape index: {}]
  %s4 = inlined_call_operand.vmem [shape: f32[1,128], index: 4, kind: input, shape index: {}]
  %s5 = inlined_call_operand.vmem [shape: bf16[128,128], index: 5, kind: input, shape index: {}]
  %s6 = inlined_call_operand.vmem [shape: f32[1,128], index: 6, kind: input, shape index: {}]
  %s7 = inlined_call_operand.vmem [shape: bf16[128,128], index: 7, kind: input, shape index: {}]
  %s8 = inlined_call_operand.vmem [shape: f32[1,128], index: 8, kind: input, shape index: {}]
  %s9 = inlined_call_operand.vmem [shape: bf16[128,256], index: 9, kind: input, shape index: {}]
  %s10 = inlined_call_operand.vmem [shape: f32[1,256], index: 10, kind: input, shape index: {}]
  %s11 = inlined_call_operand.vmem [shape: bf16[256,784], index: 11, kind: input, shape index: {}]
  %s12 = inlined_call_operand.vmem [shape: f32[1,784], index: 12, kind: input, shape index: {}]
  %s13 = inlined_call_operand.vmem [shape: f32[8,784], index: 13, kind: output, shape index: {}]
  %s14 = sld [smem:[#allocation0]]
  $region62: #{autoencoder_forward.1} parent=0
    _
  %s16 = ssub.s32 1, %s14
  %s17 = scalar_select 0, %s16, %s14
  // Predicated region
  $region2: #{autoencoder_forward.1} parent=0 // pred_check
    _
  $region3: #{autoencoder_forward.1} parent=0 // pred_check_branch
    %19 = sbr.rel (0) target = $region5
  $region4: #{autoencoder_forward.1} parent=0 // pred_region
    _
  $region5: #{autoencoder_forward.1} parent=0 // pred_fallthru
    _
  // Predicated region
  $region6: #{autoencoder_forward.1} parent=0 // pred_check
    _
  $region7: #{autoencoder_forward.1} parent=0 // pred_check_branch
    %21 = sbr.rel (0) target = $region9
  $region8: #{autoencoder_forward.1} parent=0 // pred_region
    _
  $region9: #{autoencoder_forward.1} parent=0 // pred_fallthru
    _
  // Predicated region
  $region10: #{autoencoder_forward.1} parent=0 // pred_check
    _
  $region11: #{autoencoder_forward.1} parent=0 // pred_check_branch
    %23 = sbr.rel (0) target = $region13
  $region12: #{autoencoder_forward.1} parent=0 // pred_region
    _
  $region13: #{autoencoder_forward.1} parent=0 // pred_fallthru
    _
  // Predicated region
  $region14: #{autoencoder_forward.1} parent=0 // pred_check
    _
  $region15: #{autoencoder_forward.1} parent=0 // pred_check_branch
    %25 = sbr.rel (0) target = $region17
  $region16: #{autoencoder_forward.1} parent=0 // pred_region
    _
  $region17: #{autoencoder_forward.1} parent=0 // pred_fallthru
    _
  // Predicated region
  $region18: #{autoencoder_forward.1} parent=0 // pred_check
    _
  $region19: #{autoencoder_forward.1} parent=0 // pred_check_branch
    %27 = sbr.rel (0) target = $region21
  $region20: #{autoencoder_forward.1} parent=0 // pred_region
    _
  $region21: #{autoencoder_forward.1} parent=0 // pred_fallthru
    _
  // Predicated region
  $region22: #{autoencoder_forward.1} parent=0 // pred_check
    _
  $region23: #{autoencoder_forward.1} parent=0 // pred_check_branch
    %29 = sbr.rel (0) target = $region25
  $region24: #{autoencoder_forward.1} parent=0 // pred_region
    _
  $region25: #{autoencoder_forward.1} parent=0 // pred_fallthru
    _
  // Predicated region
  $region26: #{autoencoder_forward.1} parent=0 // pred_check
    _
  $region27: #{autoencoder_forward.1} parent=0 // pred_check_branch
    %31 = sbr.rel (0) target = $region29
  $region28: #{autoencoder_forward.1} parent=0 // pred_region
    _
  $region29: #{autoencoder_forward.1} parent=0 // pred_fallthru
    _
  // Predicated region
  $region30: #{autoencoder_forward.1} parent=0 // pred_check
    _
  $region31: #{autoencoder_forward.1} parent=0 // pred_check_branch
    %33 = sbr.rel (0) target = $region33
  $region32: #{autoencoder_forward.1} parent=0 // pred_region
    _
  $region33: #{autoencoder_forward.1} parent=0 // pred_fallthru
    _
  // Predicated region
  $region34: #{autoencoder_forward.1} parent=0 // pred_check
    _
  $region35: #{autoencoder_forward.1} parent=0 // pred_check_branch
    %35 = sbr.rel (0) target = $region37
  $region36: #{autoencoder_forward.1} parent=0 // pred_region
    _
  $region37: #{autoencoder_forward.1} parent=0 // pred_fallthru
    _
  // Predicated region
  $region38: #{autoencoder_forward.1} parent=0 // pred_check
    _
  $region39: #{autoencoder_forward.1} parent=0 // pred_check_branch
    %37 = sbr.rel (0) target = $region41
  $region40: #{autoencoder_forward.1} parent=0 // pred_region
    _
  $region41: #{autoencoder_forward.1} parent=0 // pred_fallthru
    _
  // Predicated region
  $region42: #{autoencoder_forward.1} parent=0 // pred_check
    _
  $region43: #{autoencoder_forward.1} parent=0 // pred_check_branch
    %39 = sbr.rel (0) target = $region45
  $region44: #{autoencoder_forward.1} parent=0 // pred_region
    _
  $region45: #{autoencoder_forward.1} parent=0 // pred_fallthru
    _
  // Predicated region
  $region46: #{autoencoder_forward.1} parent=0 // pred_check
    _
  $region47: #{autoencoder_forward.1} parent=0 // pred_check_branch
    %41 = sbr.rel (0) target = $region49
  $region48: #{autoencoder_forward.1} parent=0 // pred_region
    _
  $region49: #{autoencoder_forward.1} parent=0 // pred_fallthru
    _
  // Predicated region
  $region50: #{autoencoder_forward.1} parent=0 // pred_check
    _
  $region51: #{autoencoder_forward.1} parent=0 // pred_check_branch
    %43 = sbr.rel (0) target = $region53
  $region52: #{autoencoder_forward.1} parent=0 // pred_region
    _
  $region53: #{autoencoder_forward.1} parent=0 // pred_fallthru
    _
  %v45 = vld [vmem:[%s0] sm:$0xff]
  %v46 = vld [vmem:[%s0 + $0x8] sm:$0xff]
  %v47 = vld [vmem:[%s0 + $0x10] sm:$0xff]
  %v48 = vld [vmem:[%s0 + $0x18] sm:$0xf]
  %v49 = vld [vmem:[%s1] sm:$0xff]
  %v50 = vld [vmem:[%s1 + $0x8] sm:$0xff]
  %v51 = vld [vmem:[%s1 + $0x10] sm:$0xff]
  %v52 = vld [vmem:[%s1 + $0x18] sm:$0xff]
  %v53 = vld [vmem:[%s1 + $0x20] sm:$0xff]
  %v54 = vld [vmem:[%s1 + $0x28] sm:$0xff]
  %v55 = vld [vmem:[%s1 + $0x30] sm:$0xff]
  %v56 = vld [vmem:[%s1 + $0x38] sm:$0xff]
  %v57 = vld [vmem:[%s1 + $0x40] sm:$0xff]
  %v58 = vld [vmem:[%s1 + $0x48] sm:$0xff]
  %v59 = vld [vmem:[%s1 + $0x50] sm:$0xff]
  %v60 = vld [vmem:[%s1 + $0x58] sm:$0xff]
  %v61 = vld [vmem:[%s1 + $0x60] sm:$0xff]
  %v62 = vld [vmem:[%s1 + $0x68] sm:$0xff]
  %v63 = vld [vmem:[%s1 + $0x70] sm:$0xff]
  %v64 = vld [vmem:[%s1 + $0x78] sm:$0xff]
  %v65 = vld [vmem:[%s1 + $0x80] sm:$0xff]
  %v66 = vld [vmem:[%s1 + $0x88] sm:$0xff]
  %v67 = vld [vmem:[%s1 + $0x90] sm:$0xff]
  %v68 = vld [vmem:[%s1 + $0x98] sm:$0xff]
  %v69 = vld [vmem:[%s1 + $0xa0] sm:$0xff]
  %v70 = vld [vmem:[%s1 + $0xa8] sm:$0xff]
  %v71 = vld [vmem:[%s1 + $0xb0] sm:$0xff]
  %v72 = vld [vmem:[%s1 + $0xb8] sm:$0xff]
  %v73 = vld [vmem:[%s1 + $0xc0] sm:$0xff]
  %v74 = vld [vmem:[%s1 + $0xc8] sm:$0xff]
  %v75 = vld [vmem:[%s1 + $0xd0] sm:$0xff]
  %v76 = vld [vmem:[%s1 + $0xd8] sm:$0xff]
  %v77 = vld [vmem:[%s1 + $0xe0] sm:$0xff]
  %v78 = vld [vmem:[%s1 + $0xe8] sm:$0xff]
  %v79 = vld [vmem:[%s1 + $0xf0] sm:$0xff]
  %v80 = vld [vmem:[%s1 + $0xf8] sm:$0xff]
  %v81 = vld [vmem:[%s1 + $0x100] sm:$0xff]
  %v82 = vld [vmem:[%s1 + $0x108] sm:$0xff]
  %v83 = vld [vmem:[%s1 + $0x110] sm:$0xff]
  %v84 = vld [vmem:[%s1 + $0x118] sm:$0xff]
  %v85 = vld [vmem:[%s1 + $0x120] sm:$0xff]
  %v86 = vld [vmem:[%s1 + $0x128] sm:$0xff]
  %v87 = vld [vmem:[%s1 + $0x130] sm:$0xff]
  %v88 = vld [vmem:[%s1 + $0x138] sm:$0xff]
  %v89 = vld [vmem:[%s1 + $0x140] sm:$0xff]
  %v90 = vld [vmem:[%s1 + $0x148] sm:$0xff]
  %v91 = vld [vmem:[%s1 + $0x150] sm:$0xff]
  %v92 = vld [vmem:[%s1 + $0x158] sm:$0xff]
  %v93 = vld [vmem:[%s1 + $0x160] sm:$0xff]
  %v94 = vld [vmem:[%s1 + $0x168] sm:$0xff]
  %v95 = vld [vmem:[%s1 + $0x170] sm:$0xff]
  %v96 = vld [vmem:[%s1 + $0x178] sm:$0xff]
  %v97 = vld [vmem:[%s1 + $0x180] sm:$0xff]
  %v98 = vld [vmem:[%s1 + $0x188] sm:$0xff]
  %v99 = vld [vmem:[%s1 + $0x190] sm:$0xff]
  %v100 = vld [vmem:[%s1 + $0x198] sm:$0xff]
  %v101 = vld [vmem:[%s1 + $0x1a0] sm:$0xff]
  %v102 = vld [vmem:[%s1 + $0x1a8] sm:$0xff]
  %v103 = vld [vmem:[%s1 + $0x1b0] sm:$0xff]
  %v104 = vld [vmem:[%s1 + $0x1b8] sm:$0xff]
  %v105 = vld [vmem:[%s1 + $0x1c0] sm:$0xff]
  %v106 = vld [vmem:[%s1 + $0x1c8] sm:$0xff]
  %v107 = vld [vmem:[%s1 + $0x1d0] sm:$0xff]
  %v108 = vld [vmem:[%s1 + $0x1d8] sm:$0xff]
  %v109 = vld [vmem:[%s1 + $0x1e0] sm:$0xff]
  %v110 = vld [vmem:[%s1 + $0x1e8] sm:$0xff]
  %v111 = vld [vmem:[%s1 + $0x1f0] sm:$0xff]
  %v112 = vld [vmem:[%s1 + $0x1f8] sm:$0xff]
  %v113 = vld [vmem:[%s1 + $0x200] sm:$0xff]
  %v114 = vld [vmem:[%s1 + $0x208] sm:$0xff]
  %v115 = vld [vmem:[%s1 + $0x210] sm:$0xff]
  %v116 = vld [vmem:[%s1 + $0x218] sm:$0xff]
  %v117 = vld [vmem:[%s1 + $0x220] sm:$0xff]
  %v118 = vld [vmem:[%s1 + $0x228] sm:$0xff]
  %v119 = vld [vmem:[%s1 + $0x230] sm:$0xff]
  %v120 = vld [vmem:[%s1 + $0x238] sm:$0xff]
  %v121 = vld [vmem:[%s1 + $0x240] sm:$0xff]
  %v122 = vld [vmem:[%s1 + $0x248] sm:$0xff]
  %v123 = vld [vmem:[%s1 + $0x250] sm:$0xff]
  %v124 = vld [vmem:[%s1 + $0x258] sm:$0xff]
  %v125 = vld [vmem:[%s1 + $0x260] sm:$0xff]
  %v126 = vld [vmem:[%s1 + $0x268] sm:$0xff]
  %v127 = vld [vmem:[%s1 + $0x270] sm:$0xff]
  %v128 = vld [vmem:[%s1 + $0x278] sm:$0xff]
  %v129 = vld [vmem:[%s1 + $0x280] sm:$0xff]
  %v130 = vld [vmem:[%s1 + $0x288] sm:$0xff]
  %v131 = vld [vmem:[%s1 + $0x290] sm:$0xff]
  %v132 = vld [vmem:[%s1 + $0x298] sm:$0xff]
  %v133 = vld [vmem:[%s1 + $0x2a0] sm:$0xff]
  %v134 = vld [vmem:[%s1 + $0x2a8] sm:$0xff]
  %v135 = vld [vmem:[%s1 + $0x2b0] sm:$0xff]
  %v136 = vld [vmem:[%s1 + $0x2b8] sm:$0xff]
  %v137 = vld [vmem:[%s1 + $0x2c0] sm:$0xff]
  %v138 = vld [vmem:[%s1 + $0x2c8] sm:$0xff]
  %v139 = vld [vmem:[%s1 + $0x2d0] sm:$0xff]
  %v140 = vld [vmem:[%s1 + $0x2d8] sm:$0xff]
  %v141 = vld [vmem:[%s1 + $0x2e0] sm:$0xff]
  %v142 = vld [vmem:[%s1 + $0x2e8] sm:$0xff]
  %v143 = vld [vmem:[%s1 + $0x2f0] sm:$0xff]
  %v144 = vld [vmem:[%s1 + $0x2f8] sm:$0xff]
  %v145 = vld [vmem:[%s1 + $0x300] sm:$0xff]
  %v146 = vld [vmem:[%s1 + $0x308] sm:$0xff]
  %v147 = vld [vmem:[%s2] sm:$0x3]
  %v149 = vlaneseq
  %v150 = vshrl.u32 %v149, 7
  %v151 = vsub.s32 0, %v150
  %v152 = vrot.slane %v147, %v151
  %v153 = vlaneseq
  %v154 = vshrl.u32 %v153, 7
  %v155 = vsub.s32 1, %v154
  %v156 = vrot.slane %v147, %v155
  %v163 = vunpack.c.l.b16 %v45
  %v164 = vunpack.c.h.b16 %v45
  %v165 = vunpack.c.l.b16 %v46
  %v166 = vunpack.c.h.b16 %v46
  %v167 = vunpack.c.l.b16 %v47
  %v168 = vunpack.c.h.b16 %v47
  %v169 = vunpack.c.l.b16 %v48
  %v170 = vpack.c.b16 %v163, %v163
  %v171 = vpack.c.b16 %v164, %v164
  %v172 = vpack.c.b16 %v165, %v165
  %v173 = vpack.c.b16 %v166, %v166
  %v174 = vpack.c.b16 %v167, %v167
  %v175 = vpack.c.b16 %v168, %v168
  %v176 = vpack.c.b16 %v169, %v169
  %v281 = vunpack.c.l.b16 %v49
  %v282 = vunpack.c.h.b16 %v49
  %v283 = vunpack.c.l.b16 %v50
  %v284 = vunpack.c.h.b16 %v50
  %v285 = vunpack.c.l.b16 %v51
  %v286 = vunpack.c.h.b16 %v51
  %v287 = vunpack.c.l.b16 %v52
  %v288 = vunpack.c.h.b16 %v52
  %v289 = vunpack.c.l.b16 %v53
  %v290 = vunpack.c.h.b16 %v53
  %v291 = vunpack.c.l.b16 %v54
  %v292 = vunpack.c.h.b16 %v54
  %v293 = vunpack.c.l.b16 %v55
  %v294 = vunpack.c.h.b16 %v55
  %v295 = vunpack.c.l.b16 %v56
  %v296 = vunpack.c.h.b16 %v56
  %v297 = vunpack.c.l.b16 %v57
  %v298 = vunpack.c.h.b16 %v57
  %v299 = vunpack.c.l.b16 %v58
  %v300 = vunpack.c.h.b16 %v58
  %v301 = vunpack.c.l.b16 %v59
  %v302 = vunpack.c.h.b16 %v59
  %v303 = vunpack.c.l.b16 %v60
  %v304 = vunpack.c.h.b16 %v60
  %v305 = vunpack.c.l.b16 %v61
  %v306 = vunpack.c.h.b16 %v61
  %v307 = vunpack.c.l.b16 %v62
  %v308 = vunpack.c.h.b16 %v62
  %v309 = vunpack.c.l.b16 %v63
  %v310 = vunpack.c.h.b16 %v63
  %v311 = vunpack.c.l.b16 %v64
  %v312 = vunpack.c.h.b16 %v64
  %v313 = vunpack.c.l.b16 %v65
  %v314 = vunpack.c.h.b16 %v65
  %v315 = vunpack.c.l.b16 %v66
  %v316 = vunpack.c.h.b16 %v66
  %v317 = vunpack.c.l.b16 %v67
  %v318 = vunpack.c.h.b16 %v67
  %v319 = vunpack.c.l.b16 %v68
  %v320 = vunpack.c.h.b16 %v68
  %v321 = vunpack.c.l.b16 %v69
  %v322 = vunpack.c.h.b16 %v69
  %v323 = vunpack.c.l.b16 %v70
  %v324 = vunpack.c.h.b16 %v70
  %v325 = vunpack.c.l.b16 %v71
  %v326 = vunpack.c.h.b16 %v71
  %v327 = vunpack.c.l.b16 %v72
  %v328 = vunpack.c.h.b16 %v72
  %v329 = vunpack.c.l.b16 %v73
  %v330 = vunpack.c.h.b16 %v73
  %v331 = vunpack.c.l.b16 %v74
  %v332 = vunpack.c.h.b16 %v74
  %v333 = vunpack.c.l.b16 %v75
  %v334 = vunpack.c.h.b16 %v75
  %v335 = vunpack.c.l.b16 %v76
  %v336 = vunpack.c.h.b16 %v76
  %v337 = vunpack.c.l.b16 %v77
  %v338 = vunpack.c.h.b16 %v77
  %v339 = vunpack.c.l.b16 %v78
  %v340 = vunpack.c.h.b16 %v78
  %v341 = vunpack.c.l.b16 %v79
  %v342 = vunpack.c.h.b16 %v79
  %v343 = vunpack.c.l.b16 %v80
  %v344 = vunpack.c.h.b16 %v80
  %v345 = vunpack.c.l.b16 %v81
  %v346 = vunpack.c.h.b16 %v81
  %v347 = vunpack.c.l.b16 %v82
  %v348 = vunpack.c.h.b16 %v82
  %v349 = vunpack.c.l.b16 %v83
  %v350 = vunpack.c.h.b16 %v83
  %v351 = vunpack.c.l.b16 %v84
  %v352 = vunpack.c.h.b16 %v84
  %v353 = vunpack.c.l.b16 %v85
  %v354 = vunpack.c.h.b16 %v85
  %v355 = vunpack.c.l.b16 %v86
  %v356 = vunpack.c.h.b16 %v86
  %v357 = vunpack.c.l.b16 %v87
  %v358 = vunpack.c.h.b16 %v87
  %v359 = vunpack.c.l.b16 %v88
  %v360 = vunpack.c.h.b16 %v88
  %v361 = vunpack.c.l.b16 %v89
  %v362 = vunpack.c.h.b16 %v89
  %v363 = vunpack.c.l.b16 %v90
  %v364 = vunpack.c.h.b16 %v90
  %v365 = vunpack.c.l.b16 %v91
  %v366 = vunpack.c.h.b16 %v91
  %v367 = vunpack.c.l.b16 %v92
  %v368 = vunpack.c.h.b16 %v92
  %v369 = vunpack.c.l.b16 %v93
  %v370 = vunpack.c.h.b16 %v93
  %v371 = vunpack.c.l.b16 %v94
  %v372 = vunpack.c.h.b16 %v94
  %v373 = vunpack.c.l.b16 %v95
  %v374 = vunpack.c.h.b16 %v95
  %v375 = vunpack.c.l.b16 %v96
  %v376 = vunpack.c.h.b16 %v96
  %v377 = vunpack.c.l.b16 %v97
  %v378 = vunpack.c.h.b16 %v97
  %v379 = vunpack.c.l.b16 %v98
  %v380 = vunpack.c.h.b16 %v98
  %v381 = vunpack.c.l.b16 %v99
  %v382 = vunpack.c.h.b16 %v99
  %v383 = vunpack.c.l.b16 %v100
  %v384 = vunpack.c.h.b16 %v100
  %v385 = vunpack.c.l.b16 %v101
  %v386 = vunpack.c.h.b16 %v101
  %v387 = vunpack.c.l.b16 %v102
  %v388 = vunpack.c.h.b16 %v102
  %v389 = vunpack.c.l.b16 %v103
  %v390 = vunpack.c.h.b16 %v103
  %v391 = vunpack.c.l.b16 %v104
  %v392 = vunpack.c.h.b16 %v104
  %v393 = vunpack.c.l.b16 %v105
  %v394 = vunpack.c.h.b16 %v105
  %v395 = vunpack.c.l.b16 %v106
  %v396 = vunpack.c.h.b16 %v106
  %v397 = vunpack.c.l.b16 %v107
  %v398 = vunpack.c.h.b16 %v107
  %v399 = vunpack.c.l.b16 %v108
  %v400 = vunpack.c.h.b16 %v108
  %v401 = vunpack.c.l.b16 %v109
  %v402 = vunpack.c.h.b16 %v109
  %v403 = vunpack.c.l.b16 %v110
  %v404 = vunpack.c.h.b16 %v110
  %v405 = vunpack.c.l.b16 %v111
  %v406 = vunpack.c.h.b16 %v111
  %v407 = vunpack.c.l.b16 %v112
  %v408 = vunpack.c.h.b16 %v112
  %v409 = vunpack.c.l.b16 %v113
  %v410 = vunpack.c.h.b16 %v113
  %v411 = vunpack.c.l.b16 %v114
  %v412 = vunpack.c.h.b16 %v114
  %v413 = vunpack.c.l.b16 %v115
  %v414 = vunpack.c.h.b16 %v115
  %v415 = vunpack.c.l.b16 %v116
  %v416 = vunpack.c.h.b16 %v116
  %v417 = vunpack.c.l.b16 %v117
  %v418 = vunpack.c.h.b16 %v117
  %v419 = vunpack.c.l.b16 %v118
  %v420 = vunpack.c.h.b16 %v118
  %v421 = vunpack.c.l.b16 %v119
  %v422 = vunpack.c.h.b16 %v119
  %v423 = vunpack.c.l.b16 %v120
  %v424 = vunpack.c.h.b16 %v120
  %v425 = vunpack.c.l.b16 %v121
  %v426 = vunpack.c.h.b16 %v121
  %v427 = vunpack.c.l.b16 %v122
  %v428 = vunpack.c.h.b16 %v122
  %v429 = vunpack.c.l.b16 %v123
  %v430 = vunpack.c.h.b16 %v123
  %v431 = vunpack.c.l.b16 %v124
  %v432 = vunpack.c.h.b16 %v124
  %v433 = vunpack.c.l.b16 %v125
  %v434 = vunpack.c.h.b16 %v125
  %v435 = vunpack.c.l.b16 %v126
  %v436 = vunpack.c.h.b16 %v126
  %v437 = vunpack.c.l.b16 %v127
  %v438 = vunpack.c.h.b16 %v127
  %v439 = vunpack.c.l.b16 %v128
  %v440 = vunpack.c.h.b16 %v128
  %v441 = vunpack.c.l.b16 %v129
  %v442 = vunpack.c.h.b16 %v129
  %v443 = vunpack.c.l.b16 %v130
  %v444 = vunpack.c.h.b16 %v130
  %v445 = vunpack.c.l.b16 %v131
  %v446 = vunpack.c.h.b16 %v131
  %v447 = vunpack.c.l.b16 %v132
  %v448 = vunpack.c.h.b16 %v132
  %v449 = vunpack.c.l.b16 %v133
  %v450 = vunpack.c.h.b16 %v133
  %v451 = vunpack.c.l.b16 %v134
  %v452 = vunpack.c.h.b16 %v134
  %v453 = vunpack.c.l.b16 %v135
  %v454 = vunpack.c.h.b16 %v135
  %v455 = vunpack.c.l.b16 %v136
  %v456 = vunpack.c.h.b16 %v136
  %v457 = vunpack.c.l.b16 %v137
  %v458 = vunpack.c.h.b16 %v137
  %v459 = vunpack.c.l.b16 %v138
  %v460 = vunpack.c.h.b16 %v138
  %v461 = vunpack.c.l.b16 %v139
  %v462 = vunpack.c.h.b16 %v139
  %v463 = vunpack.c.l.b16 %v140
  %v464 = vunpack.c.h.b16 %v140
  %v465 = vunpack.c.l.b16 %v141
  %v466 = vunpack.c.h.b16 %v141
  %v467 = vunpack.c.l.b16 %v142
  %v468 = vunpack.c.h.b16 %v142
  %v469 = vunpack.c.l.b16 %v143
  %v470 = vunpack.c.h.b16 %v143
  %v471 = vunpack.c.l.b16 %v144
  %v472 = vunpack.c.h.b16 %v144
  %v473 = vunpack.c.l.b16 %v145
  %v474 = vunpack.c.h.b16 %v145
  %v475 = vunpack.c.l.b16 %v146
  %v476 = vunpack.c.h.b16 %v146
  %v477 = vpack.c.b16 %v283, %v281
  %v478 = vpack.c.b16 %v284, %v282
  %v479 = vpack.c.b16 %v287, %v285
  %v480 = vpack.c.b16 %v288, %v286
  %v481 = vpack.c.b16 %v291, %v289
  %v482 = vpack.c.b16 %v292, %v290
  %v483 = vpack.c.b16 %v295, %v293
  %v484 = vpack.c.b16 %v296, %v294
  %v485 = vpack.c.b16 %v299, %v297
  %v486 = vpack.c.b16 %v300, %v298
  %v487 = vpack.c.b16 %v303, %v301
  %v488 = vpack.c.b16 %v304, %v302
  %v489 = vpack.c.b16 %v307, %v305
  %v490 = vpack.c.b16 %v308, %v306
  %v491 = vpack.c.b16 %v311, %v309
  %v492 = vpack.c.b16 %v312, %v310
  %v493 = vpack.c.b16 %v315, %v313
  %v494 = vpack.c.b16 %v316, %v314
  %v495 = vpack.c.b16 %v319, %v317
  %v496 = vpack.c.b16 %v320, %v318
  %v497 = vpack.c.b16 %v323, %v321
  %v498 = vpack.c.b16 %v324, %v322
  %v499 = vpack.c.b16 %v327, %v325
  %v500 = vpack.c.b16 %v328, %v326
  %v501 = vpack.c.b16 %v331, %v329
  %v502 = vpack.c.b16 %v332, %v330
  %v503 = vpack.c.b16 %v335, %v333
  %v504 = vpack.c.b16 %v336, %v334
  %v505 = vpack.c.b16 %v339, %v337
  %v506 = vpack.c.b16 %v340, %v338
  %v507 = vpack.c.b16 %v343, %v341
  %v508 = vpack.c.b16 %v344, %v342
  %v509 = vpack.c.b16 %v347, %v345
  %v510 = vpack.c.b16 %v348, %v346
  %v511 = vpack.c.b16 %v351, %v349
  %v512 = vpack.c.b16 %v352, %v350
  %v513 = vpack.c.b16 %v355, %v353
  %v514 = vpack.c.b16 %v356, %v354
  %v515 = vpack.c.b16 %v359, %v357
  %v516 = vpack.c.b16 %v360, %v358
  %v517 = vpack.c.b16 %v363, %v361
  %v518 = vpack.c.b16 %v364, %v362
  %v519 = vpack.c.b16 %v367, %v365
  %v520 = vpack.c.b16 %v368, %v366
  %v521 = vpack.c.b16 %v371, %v369
  %v522 = vpack.c.b16 %v372, %v370
  %v523 = vpack.c.b16 %v375, %v373
  %v524 = vpack.c.b16 %v376, %v374
  %v525 = vpack.c.b16 %v379, %v377
  %v526 = vpack.c.b16 %v380, %v378
  %v527 = vpack.c.b16 %v383, %v381
  %v528 = vpack.c.b16 %v384, %v382
  %v529 = vpack.c.b16 %v387, %v385
  %v530 = vpack.c.b16 %v388, %v386
  %v531 = vpack.c.b16 %v391, %v389
  %v532 = vpack.c.b16 %v392, %v390
  %v533 = vpack.c.b16 %v395, %v393
  %v534 = vpack.c.b16 %v396, %v394
  %v535 = vpack.c.b16 %v399, %v397
  %v536 = vpack.c.b16 %v400, %v398
  %v537 = vpack.c.b16 %v403, %v401
  %v538 = vpack.c.b16 %v404, %v402
  %v539 = vpack.c.b16 %v407, %v405
  %v540 = vpack.c.b16 %v408, %v406
  %v541 = vpack.c.b16 %v411, %v409
  %v542 = vpack.c.b16 %v412, %v410
  %v543 = vpack.c.b16 %v415, %v413
  %v544 = vpack.c.b16 %v416, %v414
  %v545 = vpack.c.b16 %v419, %v417
  %v546 = vpack.c.b16 %v420, %v418
  %v547 = vpack.c.b16 %v423, %v421
  %v548 = vpack.c.b16 %v424, %v422
  %v549 = vpack.c.b16 %v427, %v425
  %v550 = vpack.c.b16 %v428, %v426
  %v551 = vpack.c.b16 %v431, %v429
  %v552 = vpack.c.b16 %v432, %v430
  %v553 = vpack.c.b16 %v435, %v433
  %v554 = vpack.c.b16 %v436, %v434
  %v555 = vpack.c.b16 %v439, %v437
  %v556 = vpack.c.b16 %v440, %v438
  %v557 = vpack.c.b16 %v443, %v441
  %v558 = vpack.c.b16 %v444, %v442
  %v559 = vpack.c.b16 %v447, %v445
  %v560 = vpack.c.b16 %v448, %v446
  %v561 = vpack.c.b16 %v451, %v449
  %v562 = vpack.c.b16 %v452, %v450
  %v563 = vpack.c.b16 %v455, %v453
  %v564 = vpack.c.b16 %v456, %v454
  %v565 = vpack.c.b16 %v459, %v457
  %v566 = vpack.c.b16 %v460, %v458
  %v567 = vpack.c.b16 %v463, %v461
  %v568 = vpack.c.b16 %v464, %v462
  %v569 = vpack.c.b16 %v467, %v465
  %v570 = vpack.c.b16 %v468, %v466
  %v571 = vpack.c.b16 %v471, %v469
  %v572 = vpack.c.b16 %v472, %v470
  %v573 = vpack.c.b16 %v475, %v473
  %v574 = vpack.c.b16 %v476, %v474
  %vm673 = vcmask 130048
  %v675 = vsel %vm673, %v176, 0
  %677 = vmatprep.subr.bf16.mxu0 %v478
  %678 = vmatpush1.bf16.msra.mxu0 %v477
  %679 = vmatprep.subr.bf16.mxu0 %v480
  %680 = vmatpush1.bf16.msra.mxu0 %v479
  %681 = vmatprep.subr.bf16.mxu0 %v482
  %682 = vmatpush1.bf16.msra.mxu0 %v481
  %683 = vmatprep.subr.bf16.mxu0 %v484
  %684 = vmatpush1.bf16.msra.mxu0 %v483
  %685 = vmatprep.subr.bf16.mxu0 %v486
  %686 = vmatpush1.bf16.msra.mxu0 %v485
  %687 = vmatprep.subr.bf16.mxu0 %v488
  %688 = vmatpush1.bf16.msra.mxu0 %v487
  %689 = vmatprep.subr.bf16.mxu0 %v490
  %690 = vmatpush1.bf16.msra.mxu0 %v489
  %691 = vmatprep.subr.bf16.mxu0 %v492
  %692 = vmatpush1.bf16.msra.mxu0 %v491
  %693 = vmatprep.subr.bf16.mxu0 %v494
  %694 = vmatpush1.bf16.msra.mxu0 %v493
  %695 = vmatprep.subr.bf16.mxu0 %v496
  %696 = vmatpush1.bf16.msra.mxu0 %v495
  %697 = vmatprep.subr.bf16.mxu0 %v498
  %698 = vmatpush1.bf16.msra.mxu0 %v497
  %699 = vmatprep.subr.bf16.mxu0 %v500
  %700 = vmatpush1.bf16.msra.mxu0 %v499
  %701 = vmatprep.subr.bf16.mxu0 %v502
  %702 = vmatpush1.bf16.msra.mxu0 %v501
  %703 = vmatprep.subr.bf16.mxu0 %v504
  %704 = vmatpush1.bf16.msra.mxu0 %v503
  %705 = vmatprep.subr.bf16.mxu0 %v506
  %706 = vmatpush1.bf16.msra.mxu0 %v505
  %707 = vmatprep.subr.bf16.mxu0 %v508
  %708 = vmatpush1.bf16.msra.mxu0 %v507
  %709 = vmatprep.mubr.bf16.mxu0 %v171
  %710 = vmatmul.mubr.bf16.gmra.mrb[0].mxu0 %v170
  %v711 = vpop.f32.mrb[0].mxu0
  %v712 = vadd.f32 %v152, %v711
  %v713 = vpop.f32.mrb[0].mxu0
  %v714 = vadd.f32 %v156, %v713
  %v715 = vpop.f32.mrb[0].mxu0
  %v716 = vpop.f32.mrb[0].mxu0
  %717 = vdwg.mxu0
  %718 = vmatprep.subr.bf16.mxu0 %v510
  %719 = vmatpush1.bf16.msra.mxu0 %v509
  %720 = vmatprep.subr.bf16.mxu0 %v512
  %721 = vmatpush1.bf16.msra.mxu0 %v511
  %722 = vmatprep.subr.bf16.mxu0 %v514
  %723 = vmatpush1.bf16.msra.mxu0 %v513
  %724 = vmatprep.subr.bf16.mxu0 %v516
  %725 = vmatpush1.bf16.msra.mxu0 %v515
  %726 = vmatprep.subr.bf16.mxu0 %v518
  %727 = vmatpush1.bf16.msra.mxu0 %v517
  %728 = vmatprep.subr.bf16.mxu0 %v520
  %729 = vmatpush1.bf16.msra.mxu0 %v519
  %730 = vmatprep.subr.bf16.mxu0 %v522
  %731 = vmatpush1.bf16.msra.mxu0 %v521
  %732 = vmatprep.subr.bf16.mxu0 %v524
  %733 = vmatpush1.bf16.msra.mxu0 %v523
  %734 = vmatprep.subr.bf16.mxu0 %v526
  %735 = vmatpush1.bf16.msra.mxu0 %v525
  %736 = vmatprep.subr.bf16.mxu0 %v528
  %737 = vmatpush1.bf16.msra.mxu0 %v527
  %738 = vmatprep.subr.bf16.mxu0 %v530
  %739 = vmatpush1.bf16.msra.mxu0 %v529
  %740 = vmatprep.subr.bf16.mxu0 %v532
  %741 = vmatpush1.bf16.msra.mxu0 %v531
  %742 = vmatprep.subr.bf16.mxu0 %v534
  %743 = vmatpush1.bf16.msra.mxu0 %v533
  %744 = vmatprep.subr.bf16.mxu0 %v536
  %745 = vmatpush1.bf16.msra.mxu0 %v535
  %746 = vmatprep.subr.bf16.mxu0 %v538
  %747 = vmatpush1.bf16.msra.mxu0 %v537
  %748 = vmatprep.subr.bf16.mxu0 %v540
  %749 = vmatpush1.bf16.msra.mxu0 %v539
  %750 = vmatprep.mubr.bf16.mxu0 %v173
  %751 = vmatmul.mubr.bf16.gmra.mrb[0].mxu0 %v172
  %v752 = vpop.f32.mrb[0].mxu0
  %v753 = vadd.f32 %v712, %v752
  %v754 = vpop.f32.mrb[0].mxu0
  %v755 = vadd.f32 %v714, %v754
  %v756 = vpop.f32.mrb[0].mxu0
  %v757 = vpop.f32.mrb[0].mxu0
  %758 = vdwg.mxu0
  %759 = vmatprep.subr.bf16.mxu0 %v542
  %760 = vmatpush1.bf16.msra.mxu0 %v541
  %761 = vmatprep.subr.bf16.mxu0 %v544
  %762 = vmatpush1.bf16.msra.mxu0 %v543
  %763 = vmatprep.subr.bf16.mxu0 %v546
  %764 = vmatpush1.bf16.msra.mxu0 %v545
  %765 = vmatprep.subr.bf16.mxu0 %v548
  %766 = vmatpush1.bf16.msra.mxu0 %v547
  %767 = vmatprep.subr.bf16.mxu0 %v550
  %768 = vmatpush1.bf16.msra.mxu0 %v549
  %769 = vmatprep.subr.bf16.mxu0 %v552
  %770 = vmatpush1.bf16.msra.mxu0 %v551
  %771 = vmatprep.subr.bf16.mxu0 %v554
  %772 = vmatpush1.bf16.msra.mxu0 %v553
  %773 = vmatprep.subr.bf16.mxu0 %v556
  %774 = vmatpush1.bf16.msra.mxu0 %v555
  %775 = vmatprep.subr.bf16.mxu0 %v558
  %776 = vmatpush1.bf16.msra.mxu0 %v557
  %777 = vmatprep.subr.bf16.mxu0 %v560
  %778 = vmatpush1.bf16.msra.mxu0 %v559
  %779 = vmatprep.subr.bf16.mxu0 %v562
  %780 = vmatpush1.bf16.msra.mxu0 %v561
  %781 = vmatprep.subr.bf16.mxu0 %v564
  %782 = vmatpush1.bf16.msra.mxu0 %v563
  %783 = vmatprep.subr.bf16.mxu0 %v566
  %784 = vmatpush1.bf16.msra.mxu0 %v565
  %785 = vmatprep.subr.bf16.mxu0 %v568
  %786 = vmatpush1.bf16.msra.mxu0 %v567
  %787 = vmatprep.subr.bf16.mxu0 %v570
  %788 = vmatpush1.bf16.msra.mxu0 %v569
  %789 = vmatprep.subr.bf16.mxu0 %v572
  %790 = vmatpush1.bf16.msra.mxu0 %v571
  %791 = vmatprep.mubr.bf16.mxu0 %v175
  %792 = vmatmul.mubr.bf16.gmra.mrb[0].mxu0 %v174
  %v793 = vpop.f32.mrb[0].mxu0
  %v794 = vadd.f32 %v753, %v793
  %v795 = vpop.f32.mrb[0].mxu0
  %v796 = vadd.f32 %v755, %v795
  %v797 = vpop.f32.mrb[0].mxu0
  %v798 = vpop.f32.mrb[0].mxu0
  %799 = vdwg.mxu0
  %800 = vmatprep.subr.bf16.mxu0 %v574
  %801 = vmatpush1.bf16.msra.mxu0 %v573
  %802 = vmatprep.subr.bf16.mxu0 0
  %803 = vmatpush1.bf16.msra.mxu0 0
  %804 = vmatprep.subr.bf16.mxu0 0
  %805 = vmatpush1.bf16.msra.mxu0 0
  %806 = vmatprep.subr.bf16.mxu0 0
  %807 = vmatpush1.bf16.msra.mxu0 0
  %808 = vmatprep.subr.bf16.mxu0 0
  %809 = vmatpush1.bf16.msra.mxu0 0
  %810 = vmatprep.subr.bf16.mxu0 0
  %811 = vmatpush1.bf16.msra.mxu0 0
  %812 = vmatprep.subr.bf16.mxu0 0
  %813 = vmatpush1.bf16.msra.mxu0 0
  %814 = vmatprep.subr.bf16.mxu0 0
  %815 = vmatpush1.bf16.msra.mxu0 0
  %816 = vmatprep.subr.bf16.mxu0 0
  %817 = vmatpush1.bf16.msra.mxu0 0
  %818 = vmatprep.subr.bf16.mxu0 0
  %819 = vmatpush1.bf16.msra.mxu0 0
  %820 = vmatprep.subr.bf16.mxu0 0
  %821 = vmatpush1.bf16.msra.mxu0 0
  %822 = vmatprep.subr.bf16.mxu0 0
  %823 = vmatpush1.bf16.msra.mxu0 0
  %824 = vmatprep.subr.bf16.mxu0 0
  %825 = vmatpush1.bf16.msra.mxu0 0
  %826 = vmatprep.subr.bf16.mxu0 0
  %827 = vmatpush1.bf16.msra.mxu0 0
  %828 = vmatprep.subr.bf16.mxu0 0
  %829 = vmatpush1.bf16.msra.mxu0 0
  %830 = vmatprep.subr.bf16.mxu0 0
  %831 = vmatpush1.bf16.msra.mxu0 0
  %832 = vmatprep.mubr.bf16.mxu0 0
  %833 = vmatmul.mubr.bf16.gmra.mrb[0].mxu0 %v675
  %v834 = vpop.f32.mrb[0].mxu0
  %v835 = vadd.f32 %v794, %v834
  %v836 = vpop.f32.mrb[0].mxu0
  %v837 = vadd.f32 %v796, %v836
  %v838 = vpop.f32.mrb[0].mxu0
  %v839 = vpop.f32.mrb[0].mxu0
  %840 = vdwg.mxu0
  %v841 = vmax.f32 %v835, 0.0
  %v842 = vmax.f32 %v837, 0.0
  %v843 = vpack.c.bf16 %v841, %v841
  %v844 = vpack.c.bf16 %v842, %v842
  %v845 = vld [vmem:[%s3] sm:$0xf]
  %v846 = vld [vmem:[%s3 + $0x4] sm:$0xf]
  %v847 = vld [vmem:[%s3 + $0x8] sm:$0xf]
  %v848 = vld [vmem:[%s3 + $0xc] sm:$0xf]
  %v849 = vld [vmem:[%s3 + $0x10] sm:$0xf]
  %v850 = vld [vmem:[%s3 + $0x14] sm:$0xf]
  %v851 = vld [vmem:[%s3 + $0x18] sm:$0xf]
  %v852 = vld [vmem:[%s3 + $0x1c] sm:$0xf]
  %v853 = vld [vmem:[%s3 + $0x20] sm:$0xf]
  %v854 = vld [vmem:[%s3 + $0x24] sm:$0xf]
  %v855 = vld [vmem:[%s3 + $0x28] sm:$0xf]
  %v856 = vld [vmem:[%s3 + $0x2c] sm:$0xf]
  %v857 = vld [vmem:[%s3 + $0x30] sm:$0xf]
  %v858 = vld [vmem:[%s3 + $0x34] sm:$0xf]
  %v859 = vld [vmem:[%s3 + $0x38] sm:$0xf]
  %v860 = vld [vmem:[%s3 + $0x3c] sm:$0xf]
  %v861 = vld [vmem:[%s3 + $0x40] sm:$0xf]
  %v862 = vld [vmem:[%s3 + $0x44] sm:$0xf]
  %v863 = vld [vmem:[%s3 + $0x48] sm:$0xf]
  %v864 = vld [vmem:[%s3 + $0x4c] sm:$0xf]
  %v865 = vld [vmem:[%s3 + $0x50] sm:$0xf]
  %v866 = vld [vmem:[%s3 + $0x54] sm:$0xf]
  %v867 = vld [vmem:[%s3 + $0x58] sm:$0xf]
  %v868 = vld [vmem:[%s3 + $0x5c] sm:$0xf]
  %v869 = vld [vmem:[%s3 + $0x60] sm:$0xf]
  %v870 = vld [vmem:[%s3 + $0x64] sm:$0xf]
  %v871 = vld [vmem:[%s3 + $0x68] sm:$0xf]
  %v872 = vld [vmem:[%s3 + $0x6c] sm:$0xf]
  %v873 = vld [vmem:[%s3 + $0x70] sm:$0xf]
  %v874 = vld [vmem:[%s3 + $0x74] sm:$0xf]
  %v875 = vld [vmem:[%s3 + $0x78] sm:$0xf]
  %v876 = vld [vmem:[%s3 + $0x7c] sm:$0xf]
  %v877 = vld [vmem:[%s4] sm:$0x1]
  %v879 = vlaneseq
  %v880 = vshrl.u32 %v879, 7
  %v881 = vsub.s32 0, %v880
  %v882 = vrot.slane %v877, %v881
  %v916 = vunpack.c.l.b16 %v845
  %v917 = vunpack.c.l.b16 %v846
  %v918 = vunpack.c.l.b16 %v847
  %v919 = vunpack.c.l.b16 %v848
  %v920 = vunpack.c.l.b16 %v849
  %v921 = vunpack.c.l.b16 %v850
  %v922 = vunpack.c.l.b16 %v851
  %v923 = vunpack.c.l.b16 %v852
  %v924 = vunpack.c.l.b16 %v853
  %v925 = vunpack.c.l.b16 %v854
  %v926 = vunpack.c.l.b16 %v855
  %v927 = vunpack.c.l.b16 %v856
  %v928 = vunpack.c.l.b16 %v857
  %v929 = vunpack.c.l.b16 %v858
  %v930 = vunpack.c.l.b16 %v859
  %v931 = vunpack.c.l.b16 %v860
  %v932 = vunpack.c.l.b16 %v861
  %v933 = vunpack.c.l.b16 %v862
  %v934 = vunpack.c.l.b16 %v863
  %v935 = vunpack.c.l.b16 %v864
  %v936 = vunpack.c.l.b16 %v865
  %v937 = vunpack.c.l.b16 %v866
  %v938 = vunpack.c.l.b16 %v867
  %v939 = vunpack.c.l.b16 %v868
  %v940 = vunpack.c.l.b16 %v869
  %v941 = vunpack.c.l.b16 %v870
  %v942 = vunpack.c.l.b16 %v871
  %v943 = vunpack.c.l.b16 %v872
  %v944 = vunpack.c.l.b16 %v873
  %v945 = vunpack.c.l.b16 %v874
  %v946 = vunpack.c.l.b16 %v875
  %v947 = vunpack.c.l.b16 %v876
  %v948 = vpack.c.b16 %v917, %v916
  %v949 = vpack.c.b16 %v919, %v918
  %v950 = vpack.c.b16 %v921, %v920
  %v951 = vpack.c.b16 %v923, %v922
  %v952 = vpack.c.b16 %v925, %v924
  %v953 = vpack.c.b16 %v927, %v926
  %v954 = vpack.c.b16 %v929, %v928
  %v955 = vpack.c.b16 %v931, %v930
  %v956 = vpack.c.b16 %v933, %v932
  %v957 = vpack.c.b16 %v935, %v934
  %v958 = vpack.c.b16 %v937, %v936
  %v959 = vpack.c.b16 %v939, %v938
  %v960 = vpack.c.b16 %v941, %v940
  %v961 = vpack.c.b16 %v943, %v942
  %v962 = vpack.c.b16 %v945, %v944
  %v963 = vpack.c.b16 %v947, %v946
  %980 = vmatprep.subr.bf16.mxu0 0
  %981 = vmatpush1.bf16.msra.mxu0 %v948
  %982 = vmatprep.subr.bf16.mxu0 0
  %983 = vmatpush1.bf16.msra.mxu0 %v949
  %984 = vmatprep.subr.bf16.mxu0 0
  %985 = vmatpush1.bf16.msra.mxu0 %v950
  %986 = vmatprep.subr.bf16.mxu0 0
  %987 = vmatpush1.bf16.msra.mxu0 %v951
  %988 = vmatprep.subr.bf16.mxu0 0
  %989 = vmatpush1.bf16.msra.mxu0 %v952
  %990 = vmatprep.subr.bf16.mxu0 0
  %991 = vmatpush1.bf16.msra.mxu0 %v953
  %992 = vmatprep.subr.bf16.mxu0 0
  %993 = vmatpush1.bf16.msra.mxu0 %v954
  %994 = vmatprep.subr.bf16.mxu0 0
  %995 = vmatpush1.bf16.msra.mxu0 %v955
  %996 = vmatprep.subr.bf16.mxu0 0
  %997 = vmatpush1.bf16.msra.mxu0 %v956
  %998 = vmatprep.subr.bf16.mxu0 0
  %999 = vmatpush1.bf16.msra.mxu0 %v957
  %1000 = vmatprep.subr.bf16.mxu0 0
  %1001 = vmatpush1.bf16.msra.mxu0 %v958
  %1002 = vmatprep.subr.bf16.mxu0 0
  %1003 = vmatpush1.bf16.msra.mxu0 %v959
  %1004 = vmatprep.subr.bf16.mxu0 0
  %1005 = vmatpush1.bf16.msra.mxu0 %v960
  %1006 = vmatprep.subr.bf16.mxu0 0
  %1007 = vmatpush1.bf16.msra.mxu0 %v961
  %1008 = vmatprep.subr.bf16.mxu0 0
  %1009 = vmatpush1.bf16.msra.mxu0 %v962
  %1010 = vmatprep.subr.bf16.mxu0 0
  %1011 = vmatpush1.bf16.msra.mxu0 %v963
  %1012 = vmatprep.mubr.bf16.mxu0 %v844
  %1013 = vmatmul.mubr.bf16.gmra.mrb[0].mxu0 %v843
  %v1014 = vpop.f32.mrb[0].mxu0
  %v1015 = vadd.f32 %v882, %v1014
  %v1016 = vpop.f32.mrb[0].mxu0
  %v1017 = vpop.f32.mrb[0].mxu0
  %v1018 = vpop.f32.mrb[0].mxu0
  %1019 = vdwg.mxu0
  %v1020 = vmax.f32 %v1015, 0.0
  %v1021 = vpack.c.bf16 %v1020, %v1020
  %v1022 = vld [vmem:[%s5] sm:$0xf]
  %v1023 = vld [vmem:[%s5 + $0x4] sm:$0xf]
  %v1024 = vld [vmem:[%s5 + $0x8] sm:$0xf]
  %v1025 = vld [vmem:[%s5 + $0xc] sm:$0xf]
  %v1026 = vld [vmem:[%s5 + $0x10] sm:$0xf]
  %v1027 = vld [vmem:[%s5 + $0x14] sm:$0xf]
  %v1028 = vld [vmem:[%s5 + $0x18] sm:$0xf]
  %v1029 = vld [vmem:[%s5 + $0x1c] sm:$0xf]
  %v1030 = vld [vmem:[%s5 + $0x20] sm:$0xf]
  %v1031 = vld [vmem:[%s5 + $0x24] sm:$0xf]
  %v1032 = vld [vmem:[%s5 + $0x28] sm:$0xf]
  %v1033 = vld [vmem:[%s5 + $0x2c] sm:$0xf]
  %v1034 = vld [vmem:[%s5 + $0x30] sm:$0xf]
  %v1035 = vld [vmem:[%s5 + $0x34] sm:$0xf]
  %v1036 = vld [vmem:[%s5 + $0x38] sm:$0xf]
  %v1037 = vld [vmem:[%s5 + $0x3c] sm:$0xf]
  %v1038 = vld [vmem:[%s6] sm:$0x1]
  %v1040 = vlaneseq
  %v1041 = vshrl.u32 %v1040, 7
  %v1042 = vsub.s32 0, %v1041
  %v1043 = vrot.slane %v1038, %v1042
  %v1061 = vunpack.c.l.b16 %v1022
  %v1062 = vunpack.c.l.b16 %v1023
  %v1063 = vunpack.c.l.b16 %v1024
  %v1064 = vunpack.c.l.b16 %v1025
  %v1065 = vunpack.c.l.b16 %v1026
  %v1066 = vunpack.c.l.b16 %v1027
  %v1067 = vunpack.c.l.b16 %v1028
  %v1068 = vunpack.c.l.b16 %v1029
  %v1069 = vunpack.c.l.b16 %v1030
  %v1070 = vunpack.c.l.b16 %v1031
  %v1071 = vunpack.c.l.b16 %v1032
  %v1072 = vunpack.c.l.b16 %v1033
  %v1073 = vunpack.c.l.b16 %v1034
  %v1074 = vunpack.c.l.b16 %v1035
  %v1075 = vunpack.c.l.b16 %v1036
  %v1076 = vunpack.c.l.b16 %v1037
  %v1077 = vpack.c.b16 %v1062, %v1061
  %v1078 = vpack.c.b16 %v1064, %v1063
  %v1079 = vpack.c.b16 %v1066, %v1065
  %v1080 = vpack.c.b16 %v1068, %v1067
  %v1081 = vpack.c.b16 %v1070, %v1069
  %v1082 = vpack.c.b16 %v1072, %v1071
  %v1083 = vpack.c.b16 %v1074, %v1073
  %v1084 = vpack.c.b16 %v1076, %v1075
  %1093 = vmatprep.subr.bf16.mxu0 0
  %1094 = vmatpush1.bf16.msra.mxu0 %v1077
  %1095 = vmatprep.subr.bf16.mxu0 0
  %1096 = vmatpush1.bf16.msra.mxu0 %v1078
  %1097 = vmatprep.subr.bf16.mxu0 0
  %1098 = vmatpush1.bf16.msra.mxu0 %v1079
  %1099 = vmatprep.subr.bf16.mxu0 0
  %1100 = vmatpush1.bf16.msra.mxu0 %v1080
  %1101 = vmatprep.subr.bf16.mxu0 0
  %1102 = vmatpush1.bf16.msra.mxu0 %v1081
  %1103 = vmatprep.subr.bf16.mxu0 0
  %1104 = vmatpush1.bf16.msra.mxu0 %v1082
  %1105 = vmatprep.subr.bf16.mxu0 0
  %1106 = vmatpush1.bf16.msra.mxu0 %v1083
  %1107 = vmatprep.subr.bf16.mxu0 0
  %1108 = vmatpush1.bf16.msra.mxu0 %v1084
  %1109 = vmatprep.subr.bf16.mxu0 0
  %1110 = vmatpush1.bf16.msra.mxu0 0
  %1111 = vmatprep.subr.bf16.mxu0 0
  %1112 = vmatpush1.bf16.msra.mxu0 0
  %1113 = vmatprep.subr.bf16.mxu0 0
  %1114 = vmatpush1.bf16.msra.mxu0 0
  %1115 = vmatprep.subr.bf16.mxu0 0
  %1116 = vmatpush1.bf16.msra.mxu0 0
  %1117 = vmatprep.subr.bf16.mxu0 0
  %1118 = vmatpush1.bf16.msra.mxu0 0
  %1119 = vmatprep.subr.bf16.mxu0 0
  %1120 = vmatpush1.bf16.msra.mxu0 0
  %1121 = vmatprep.subr.bf16.mxu0 0
  %1122 = vmatpush1.bf16.msra.mxu0 0
  %1123 = vmatprep.subr.bf16.mxu0 0
  %1124 = vmatpush1.bf16.msra.mxu0 0
  %1125 = vmatprep.mubr.bf16.mxu0 0
  %1126 = vmatmul.mubr.bf16.gmra.mrb[0].mxu0 %v1021
  %v1127 = vpop.f32.mrb[0].mxu0
  %v1128 = vadd.f32 %v1043, %v1127
  %v1129 = vpop.f32.mrb[0].mxu0
  %v1130 = vpop.f32.mrb[0].mxu0
  %v1131 = vpop.f32.mrb[0].mxu0
  %1132 = vdwg.mxu0
  %v1133 = vmax.f32 %v1128, 0.0
  %v1134 = vpack.c.bf16 %v1133, %v1133
  %v1135 = vld [vmem:[%s7] sm:$0xf]
  %v1136 = vld [vmem:[%s7 + $0x4] sm:$0xf]
  %v1137 = vld [vmem:[%s7 + $0x8] sm:$0xf]
  %v1138 = vld [vmem:[%s7 + $0xc] sm:$0xf]
  %v1139 = vld [vmem:[%s7 + $0x10] sm:$0xf]
  %v1140 = vld [vmem:[%s7 + $0x14] sm:$0xf]
  %v1141 = vld [vmem:[%s7 + $0x18] sm:$0xf]
  %v1142 = vld [vmem:[%s7 + $0x1c] sm:$0xf]
  %v1143 = vld [vmem:[%s7 + $0x20] sm:$0xf]
  %v1144 = vld [vmem:[%s7 + $0x24] sm:$0xf]
  %v1145 = vld [vmem:[%s7 + $0x28] sm:$0xf]
  %v1146 = vld [vmem:[%s7 + $0x2c] sm:$0xf]
  %v1147 = vld [vmem:[%s7 + $0x30] sm:$0xf]
  %v1148 = vld [vmem:[%s7 + $0x34] sm:$0xf]
  %v1149 = vld [vmem:[%s7 + $0x38] sm:$0xf]
  %v1150 = vld [vmem:[%s7 + $0x3c] sm:$0xf]
  %v1151 = vld [vmem:[%s8] sm:$0x1]
  %v1153 = vlaneseq
  %v1154 = vshrl.u32 %v1153, 7
  %v1155 = vsub.s32 0, %v1154
  %v1156 = vrot.slane %v1151, %v1155
  %v1174 = vunpack.c.l.b16 %v1135
  %v1175 = vunpack.c.l.b16 %v1136
  %v1176 = vunpack.c.l.b16 %v1137
  %v1177 = vunpack.c.l.b16 %v1138
  %v1178 = vunpack.c.l.b16 %v1139
  %v1179 = vunpack.c.l.b16 %v1140
  %v1180 = vunpack.c.l.b16 %v1141
  %v1181 = vunpack.c.l.b16 %v1142
  %v1182 = vunpack.c.l.b16 %v1143
  %v1183 = vunpack.c.l.b16 %v1144
  %v1184 = vunpack.c.l.b16 %v1145
  %v1185 = vunpack.c.l.b16 %v1146
  %v1186 = vunpack.c.l.b16 %v1147
  %v1187 = vunpack.c.l.b16 %v1148
  %v1188 = vunpack.c.l.b16 %v1149
  %v1189 = vunpack.c.l.b16 %v1150
  %v1190 = vpack.c.b16 %v1175, %v1174
  %v1191 = vpack.c.b16 %v1177, %v1176
  %v1192 = vpack.c.b16 %v1179, %v1178
  %v1193 = vpack.c.b16 %v1181, %v1180
  %v1194 = vpack.c.b16 %v1183, %v1182
  %v1195 = vpack.c.b16 %v1185, %v1184
  %v1196 = vpack.c.b16 %v1187, %v1186
  %v1197 = vpack.c.b16 %v1189, %v1188
  %1206 = vmatprep.subr.bf16.mxu0 0
  %1207 = vmatpush1.bf16.msra.mxu0 %v1190
  %1208 = vmatprep.subr.bf16.mxu0 0
  %1209 = vmatpush1.bf16.msra.mxu0 %v1191
  %1210 = vmatprep.subr.bf16.mxu0 0
  %1211 = vmatpush1.bf16.msra.mxu0 %v1192
  %1212 = vmatprep.subr.bf16.mxu0 0
  %1213 = vmatpush1.bf16.msra.mxu0 %v1193
  %1214 = vmatprep.subr.bf16.mxu0 0
  %1215 = vmatpush1.bf16.msra.mxu0 %v1194
  %1216 = vmatprep.subr.bf16.mxu0 0
  %1217 = vmatpush1.bf16.msra.mxu0 %v1195
  %1218 = vmatprep.subr.bf16.mxu0 0
  %1219 = vmatpush1.bf16.msra.mxu0 %v1196
  %1220 = vmatprep.subr.bf16.mxu0 0
  %1221 = vmatpush1.bf16.msra.mxu0 %v1197
  %1222 = vmatprep.subr.bf16.mxu0 0
  %1223 = vmatpush1.bf16.msra.mxu0 0
  %1224 = vmatprep.subr.bf16.mxu0 0
  %1225 = vmatpush1.bf16.msra.mxu0 0
  %1226 = vmatprep.subr.bf16.mxu0 0
  %1227 = vmatpush1.bf16.msra.mxu0 0
  %1228 = vmatprep.subr.bf16.mxu0 0
  %1229 = vmatpush1.bf16.msra.mxu0 0
  %1230 = vmatprep.subr.bf16.mxu0 0
  %1231 = vmatpush1.bf16.msra.mxu0 0
  %1232 = vmatprep.subr.bf16.mxu0 0
  %1233 = vmatpush1.bf16.msra.mxu0 0
  %1234 = vmatprep.subr.bf16.mxu0 0
  %1235 = vmatpush1.bf16.msra.mxu0 0
  %1236 = vmatprep.subr.bf16.mxu0 0
  %1237 = vmatpush1.bf16.msra.mxu0 0
  %1238 = vmatprep.mubr.bf16.mxu0 0
  %1239 = vmatmul.mubr.bf16.gmra.mrb[0].mxu0 %v1134
  %v1240 = vpop.f32.mrb[0].mxu0
  %v1241 = vadd.f32 %v1156, %v1240
  %v1242 = vpop.f32.mrb[0].mxu0
  %v1243 = vpop.f32.mrb[0].mxu0
  %v1244 = vpop.f32.mrb[0].mxu0
  %1245 = vdwg.mxu0
  %v1246 = vmax.f32 %v1241, 0.0
  %v1247 = vpack.c.bf16 %v1246, %v1246
  %v1248 = vld [vmem:[%s9] sm:$0xff]
  %v1249 = vld [vmem:[%s9 + $0x8] sm:$0xff]
  %v1250 = vld [vmem:[%s9 + $0x10] sm:$0xff]
  %v1251 = vld [vmem:[%s9 + $0x18] sm:$0xff]
  %v1252 = vld [vmem:[%s9 + $0x20] sm:$0xff]
  %v1253 = vld [vmem:[%s9 + $0x28] sm:$0xff]
  %v1254 = vld [vmem:[%s9 + $0x30] sm:$0xff]
  %v1255 = vld [vmem:[%s9 + $0x38] sm:$0xff]
  %v1256 = vld [vmem:[%s9 + $0x40] sm:$0xff]
  %v1257 = vld [vmem:[%s9 + $0x48] sm:$0xff]
  %v1258 = vld [vmem:[%s9 + $0x50] sm:$0xff]
  %v1259 = vld [vmem:[%s9 + $0x58] sm:$0xff]
  %v1260 = vld [vmem:[%s9 + $0x60] sm:$0xff]
  %v1261 = vld [vmem:[%s9 + $0x68] sm:$0xff]
  %v1262 = vld [vmem:[%s9 + $0x70] sm:$0xff]
  %v1263 = vld [vmem:[%s9 + $0x78] sm:$0xff]
  %v1264 = vld [vmem:[%s10] sm:$0x3]
  %v1266 = vlaneseq
  %v1267 = vshrl.u32 %v1266, 7
  %v1268 = vsub.s32 0, %v1267
  %v1269 = vrot.slane %v1264, %v1268
  %v1270 = vlaneseq
  %v1271 = vshrl.u32 %v1270, 7
  %v1272 = vsub.s32 1, %v1271
  %v1273 = vrot.slane %v1264, %v1272
  %v1292 = vunpack.c.l.b16 %v1248
  %v1293 = vunpack.c.h.b16 %v1248
  %v1294 = vunpack.c.l.b16 %v1249
  %v1295 = vunpack.c.h.b16 %v1249
  %v1296 = vunpack.c.l.b16 %v1250
  %v1297 = vunpack.c.h.b16 %v1250
  %v1298 = vunpack.c.l.b16 %v1251
  %v1299 = vunpack.c.h.b16 %v1251
  %v1300 = vunpack.c.l.b16 %v1252
  %v1301 = vunpack.c.h.b16 %v1252
  %v1302 = vunpack.c.l.b16 %v1253
  %v1303 = vunpack.c.h.b16 %v1253
  %v1304 = vunpack.c.l.b16 %v1254
  %v1305 = vunpack.c.h.b16 %v1254
  %v1306 = vunpack.c.l.b16 %v1255
  %v1307 = vunpack.c.h.b16 %v1255
  %v1308 = vunpack.c.l.b16 %v1256
  %v1309 = vunpack.c.h.b16 %v1256
  %v1310 = vunpack.c.l.b16 %v1257
  %v1311 = vunpack.c.h.b16 %v1257
  %v1312 = vunpack.c.l.b16 %v1258
  %v1313 = vunpack.c.h.b16 %v1258
  %v1314 = vunpack.c.l.b16 %v1259
  %v1315 = vunpack.c.h.b16 %v1259
  %v1316 = vunpack.c.l.b16 %v1260
  %v1317 = vunpack.c.h.b16 %v1260
  %v1318 = vunpack.c.l.b16 %v1261
  %v1319 = vunpack.c.h.b16 %v1261
  %v1320 = vunpack.c.l.b16 %v1262
  %v1321 = vunpack.c.h.b16 %v1262
  %v1322 = vunpack.c.l.b16 %v1263
  %v1323 = vunpack.c.h.b16 %v1263
  %v1324 = vpack.c.b16 %v1294, %v1292
  %v1325 = vpack.c.b16 %v1295, %v1293
  %v1326 = vpack.c.b16 %v1298, %v1296
  %v1327 = vpack.c.b16 %v1299, %v1297
  %v1328 = vpack.c.b16 %v1302, %v1300
  %v1329 = vpack.c.b16 %v1303, %v1301
  %v1330 = vpack.c.b16 %v1306, %v1304
  %v1331 = vpack.c.b16 %v1307, %v1305
  %v1332 = vpack.c.b16 %v1310, %v1308
  %v1333 = vpack.c.b16 %v1311, %v1309
  %v1334 = vpack.c.b16 %v1314, %v1312
  %v1335 = vpack.c.b16 %v1315, %v1313
  %v1336 = vpack.c.b16 %v1318, %v1316
  %v1337 = vpack.c.b16 %v1319, %v1317
  %v1338 = vpack.c.b16 %v1322, %v1320
  %v1339 = vpack.c.b16 %v1323, %v1321
  %1356 = vmatprep.subr.bf16.mxu0 %v1325
  %1357 = vmatpush1.bf16.msra.mxu0 %v1324
  %1358 = vmatprep.subr.bf16.mxu0 %v1327
  %1359 = vmatpush1.bf16.msra.mxu0 %v1326
  %1360 = vmatprep.subr.bf16.mxu0 %v1329
  %1361 = vmatpush1.bf16.msra.mxu0 %v1328
  %1362 = vmatprep.subr.bf16.mxu0 %v1331
  %1363 = vmatpush1.bf16.msra.mxu0 %v1330
  %1364 = vmatprep.subr.bf16.mxu0 %v1333
  %1365 = vmatpush1.bf16.msra.mxu0 %v1332
  %1366 = vmatprep.subr.bf16.mxu0 %v1335
  %1367 = vmatpush1.bf16.msra.mxu0 %v1334
  %1368 = vmatprep.subr.bf16.mxu0 %v1337
  %1369 = vmatpush1.bf16.msra.mxu0 %v1336
  %1370 = vmatprep.subr.bf16.mxu0 %v1339
  %1371 = vmatpush1.bf16.msra.mxu0 %v1338
  %1372 = vmatprep.subr.bf16.mxu0 0
  %1373 = vmatpush1.bf16.msra.mxu0 0
  %1374 = vmatprep.subr.bf16.mxu0 0
  %1375 = vmatpush1.bf16.msra.mxu0 0
  %1376 = vmatprep.subr.bf16.mxu0 0
  %1377 = vmatpush1.bf16.msra.mxu0 0
  %1378 = vmatprep.subr.bf16.mxu0 0
  %1379 = vmatpush1.bf16.msra.mxu0 0
  %1380 = vmatprep.subr.bf16.mxu0 0
  %1381 = vmatpush1.bf16.msra.mxu0 0
  %1382 = vmatprep.subr.bf16.mxu0 0
  %1383 = vmatpush1.bf16.msra.mxu0 0
  %1384 = vmatprep.subr.bf16.mxu0 0
  %1385 = vmatpush1.bf16.msra.mxu0 0
  %1386 = vmatprep.subr.bf16.mxu0 0
  %1387 = vmatpush1.bf16.msra.mxu0 0
  %1388 = vmatprep.mubr.bf16.mxu0 0
  %1389 = vmatmul.mubr.bf16.gmra.mrb[0].mxu0 %v1247
  %v1390 = vpop.f32.mrb[0].mxu0
  %v1391 = vadd.f32 %v1269, %v1390
  %v1392 = vpop.f32.mrb[0].mxu0
  %v1393 = vadd.f32 %v1273, %v1392
  %v1394 = vpop.f32.mrb[0].mxu0
  %v1395 = vpop.f32.mrb[0].mxu0
  %1396 = vdwg.mxu0
  %v1397 = vmax.f32 %v1391, 0.0
  %v1398 = vmax.f32 %v1393, 0.0
  %v1399 = vpack.c.bf16 %v1397, %v1397
  %v1400 = vpack.c.bf16 %v1398, %v1398
  %v1401 = vld [vmem:[%s11] sm:$0xff]
  %v1402 = vld [vmem:[%s11 + $0x8] sm:$0xff]
  %v1403 = vld [vmem:[%s11 + $0x10] sm:$0xff]
  %v1404 = vld [vmem:[%s11 + $0x18] sm:$0xf]
  %v1405 = vld [vmem:[%s11 + $0x1c] sm:$0xff]
  %v1406 = vld [vmem:[%s11 + $0x24] sm:$0xff]
  %v1407 = vld [vmem:[%s11 + $0x2c] sm:$0xff]
  %v1408 = vld [vmem:[%s11 + $0x34] sm:$0xf]
  %v1409 = vld [vmem:[%s11 + $0x38] sm:$0xff]
  %v1410 = vld [vmem:[%s11 + $0x40] sm:$0xff]
  %v1411 = vld [vmem:[%s11 + $0x48] sm:$0xff]
  %v1412 = vld [vmem:[%s11 + $0x50] sm:$0xf]
  %v1413 = vld [vmem:[%s11 + $0x54] sm:$0xff]
  %v1414 = vld [vmem:[%s11 + $0x5c] sm:$0xff]
  %v1415 = vld [vmem:[%s11 + $0x64] sm:$0xff]
  %v1416 = vld [vmem:[%s11 + $0x6c] sm:$0xf]
  %v1417 = vld [vmem:[%s11 + $0x70] sm:$0xff]
  %v1418 = vld [vmem:[%s11 + $0x78] sm:$0xff]
  %v1419 = vld [vmem:[%s11 + $0x80] sm:$0xff]
  %v1420 = vld [vmem:[%s11 + $0x88] sm:$0xf]
  %v1421 = vld [vmem:[%s11 + $0x8c] sm:$0xff]
  %v1422 = vld [vmem:[%s11 + $0x94] sm:$0xff]
  %v1423 = vld [vmem:[%s11 + $0x9c] sm:$0xff]
  %v1424 = vld [vmem:[%s11 + $0xa4] sm:$0xf]
  %v1425 = vld [vmem:[%s11 + $0xa8] sm:$0xff]
  %v1426 = vld [vmem:[%s11 + $0xb0] sm:$0xff]
  %v1427 = vld [vmem:[%s11 + $0xb8] sm:$0xff]
  %v1428 = vld [vmem:[%s11 + $0xc0] sm:$0xf]
  %v1429 = vld [vmem:[%s11 + $0xc4] sm:$0xff]
  %v1430 = vld [vmem:[%s11 + $0xcc] sm:$0xff]
  %v1431 = vld [vmem:[%s11 + $0xd4] sm:$0xff]
  %v1432 = vld [vmem:[%s11 + $0xdc] sm:$0xf]
  %v1433 = vld [vmem:[%s11 + $0xe0] sm:$0xff]
  %v1434 = vld [vmem:[%s11 + $0xe8] sm:$0xff]
  %v1435 = vld [vmem:[%s11 + $0xf0] sm:$0xff]
  %v1436 = vld [vmem:[%s11 + $0xf8] sm:$0xf]
  %v1437 = vld [vmem:[%s11 + $0xfc] sm:$0xff]
  %v1438 = vld [vmem:[%s11 + $0x104] sm:$0xff]
  %v1439 = vld [vmem:[%s11 + $0x10c] sm:$0xff]
  %v1440 = vld [vmem:[%s11 + $0x114] sm:$0xf]
  %v1441 = vld [vmem:[%s11 + $0x118] sm:$0xff]
  %v1442 = vld [vmem:[%s11 + $0x120] sm:$0xff]
  %v1443 = vld [vmem:[%s11 + $0x128] sm:$0xff]
  %v1444 = vld [vmem:[%s11 + $0x130] sm:$0xf]
  %v1445 = vld [vmem:[%s11 + $0x134] sm:$0xff]
  %v1446 = vld [vmem:[%s11 + $0x13c] sm:$0xff]
  %v1447 = vld [vmem:[%s11 + $0x144] sm:$0xff]
  %v1448 = vld [vmem:[%s11 + $0x14c] sm:$0xf]
  %v1449 = vld [vmem:[%s11 + $0x150] sm:$0xff]
  %v1450 = vld [vmem:[%s11 + $0x158] sm:$0xff]
  %v1451 = vld [vmem:[%s11 + $0x160] sm:$0xff]
  %v1452 = vld [vmem:[%s11 + $0x168] sm:$0xf]
  %v1453 = vld [vmem:[%s11 + $0x16c] sm:$0xff]
  %v1454 = vld [vmem:[%s11 + $0x174] sm:$0xff]
  %v1455 = vld [vmem:[%s11 + $0x17c] sm:$0xff]
  %v1456 = vld [vmem:[%s11 + $0x184] sm:$0xf]
  %v1457 = vld [vmem:[%s11 + $0x188] sm:$0xff]
  %v1458 = vld [vmem:[%s11 + $0x190] sm:$0xff]
  %v1459 = vld [vmem:[%s11 + $0x198] sm:$0xff]
  %v1460 = vld [vmem:[%s11 + $0x1a0] sm:$0xf]
  %v1461 = vld [vmem:[%s11 + $0x1a4] sm:$0xff]
  %v1462 = vld [vmem:[%s11 + $0x1ac] sm:$0xff]
  %v1463 = vld [vmem:[%s11 + $0x1b4] sm:$0xff]
  %v1464 = vld [vmem:[%s11 + $0x1bc] sm:$0xf]
  %v1465 = vld [vmem:[%s11 + $0x1c0] sm:$0xff]
  %v1466 = vld [vmem:[%s11 + $0x1c8] sm:$0xff]
  %v1467 = vld [vmem:[%s11 + $0x1d0] sm:$0xff]
  %v1468 = vld [vmem:[%s11 + $0x1d8] sm:$0xf]
  %v1469 = vld [vmem:[%s11 + $0x1dc] sm:$0xff]
  %v1470 = vld [vmem:[%s11 + $0x1e4] sm:$0xff]
  %v1471 = vld [vmem:[%s11 + $0x1ec] sm:$0xff]
  %v1472 = vld [vmem:[%s11 + $0x1f4] sm:$0xf]
  %v1473 = vld [vmem:[%s11 + $0x1f8] sm:$0xff]
  %v1474 = vld [vmem:[%s11 + $0x200] sm:$0xff]
  %v1475 = vld [vmem:[%s11 + $0x208] sm:$0xff]
  %v1476 = vld [vmem:[%s11 + $0x210] sm:$0xf]
  %v1477 = vld [vmem:[%s11 + $0x214] sm:$0xff]
  %v1478 = vld [vmem:[%s11 + $0x21c] sm:$0xff]
  %v1479 = vld [vmem:[%s11 + $0x224] sm:$0xff]
  %v1480 = vld [vmem:[%s11 + $0x22c] sm:$0xf]
  %v1481 = vld [vmem:[%s11 + $0x230] sm:$0xff]
  %v1482 = vld [vmem:[%s11 + $0x238] sm:$0xff]
  %v1483 = vld [vmem:[%s11 + $0x240] sm:$0xff]
  %v1484 = vld [vmem:[%s11 + $0x248] sm:$0xf]
  %v1485 = vld [vmem:[%s11 + $0x24c] sm:$0xff]
  %v1486 = vld [vmem:[%s11 + $0x254] sm:$0xff]
  %v1487 = vld [vmem:[%s11 + $0x25c] sm:$0xff]
  %v1488 = vld [vmem:[%s11 + $0x264] sm:$0xf]
  %v1489 = vld [vmem:[%s11 + $0x268] sm:$0xff]
  %v1490 = vld [vmem:[%s11 + $0x270] sm:$0xff]
  %v1491 = vld [vmem:[%s11 + $0x278] sm:$0xff]
  %v1492 = vld [vmem:[%s11 + $0x280] sm:$0xf]
  %v1493 = vld [vmem:[%s11 + $0x284] sm:$0xff]
  %v1494 = vld [vmem:[%s11 + $0x28c] sm:$0xff]
  %v1495 = vld [vmem:[%s11 + $0x294] sm:$0xff]
  %v1496 = vld [vmem:[%s11 + $0x29c] sm:$0xf]
  %v1497 = vld [vmem:[%s11 + $0x2a0] sm:$0xff]
  %v1498 = vld [vmem:[%s11 + $0x2a8] sm:$0xff]
  %v1499 = vld [vmem:[%s11 + $0x2b0] sm:$0xff]
  %v1500 = vld [vmem:[%s11 + $0x2b8] sm:$0xf]
  %v1501 = vld [vmem:[%s11 + $0x2bc] sm:$0xff]
  %v1502 = vld [vmem:[%s11 + $0x2c4] sm:$0xff]
  %v1503 = vld [vmem:[%s11 + $0x2cc] sm:$0xff]
  %v1504 = vld [vmem:[%s11 + $0x2d4] sm:$0xf]
  %v1505 = vld [vmem:[%s11 + $0x2d8] sm:$0xff]
  %v1506 = vld [vmem:[%s11 + $0x2e0] sm:$0xff]
  %v1507 = vld [vmem:[%s11 + $0x2e8] sm:$0xff]
  %v1508 = vld [vmem:[%s11 + $0x2f0] sm:$0xf]
  %v1509 = vld [vmem:[%s11 + $0x2f4] sm:$0xff]
  %v1510 = vld [vmem:[%s11 + $0x2fc] sm:$0xff]
  %v1511 = vld [vmem:[%s11 + $0x304] sm:$0xff]
  %v1512 = vld [vmem:[%s11 + $0x30c] sm:$0xf]
  %v1513 = vld [vmem:[%s11 + $0x310] sm:$0xff]
  %v1514 = vld [vmem:[%s11 + $0x318] sm:$0xff]
  %v1515 = vld [vmem:[%s11 + $0x320] sm:$0xff]
  %v1516 = vld [vmem:[%s11 + $0x328] sm:$0xf]
  %v1517 = vld [vmem:[%s11 + $0x32c] sm:$0xff]
  %v1518 = vld [vmem:[%s11 + $0x334] sm:$0xff]
  %v1519 = vld [vmem:[%s11 + $0x33c] sm:$0xff]
  %v1520 = vld [vmem:[%s11 + $0x344] sm:$0xf]
  %v1521 = vld [vmem:[%s11 + $0x348] sm:$0xff]
  %v1522 = vld [vmem:[%s11 + $0x350] sm:$0xff]
  %v1523 = vld [vmem:[%s11 + $0x358] sm:$0xff]
  %v1524 = vld [vmem:[%s11 + $0x360] sm:$0xf]
  %v1525 = vld [vmem:[%s11 + $0x364] sm:$0xff]
  %v1526 = vld [vmem:[%s11 + $0x36c] sm:$0xff]
  %v1527 = vld [vmem:[%s11 + $0x374] sm:$0xff]
  %v1528 = vld [vmem:[%s11 + $0x37c] sm:$0xf]
  %v1529 = vld [vmem:[%s12] sm:$0x7f]
  %v1531 = vlaneseq
  %v1532 = vshrl.u32 %v1531, 7
  %v1533 = vsub.s32 0, %v1532
  %v1534 = vrot.slane %v1529, %v1533
  %v1535 = vlaneseq
  %v1536 = vshrl.u32 %v1535, 7
  %v1537 = vsub.s32 1, %v1536
  %v1538 = vrot.slane %v1529, %v1537
  %v1539 = vlaneseq
  %v1540 = vshrl.u32 %v1539, 7
  %v1541 = vsub.s32 2, %v1540
  %v1542 = vrot.slane %v1529, %v1541
  %v1543 = vlaneseq
  %v1544 = vshrl.u32 %v1543, 7
  %v1545 = vsub.s32 3, %v1544
  %v1546 = vrot.slane %v1529, %v1545
  %v1547 = vlaneseq
  %v1548 = vshrl.u32 %v1547, 7
  %v1549 = vsub.s32 4, %v1548
  %v1550 = vrot.slane %v1529, %v1549
  %v1551 = vlaneseq
  %v1552 = vshrl.u32 %v1551, 7
  %v1553 = vsub.s32 5, %v1552
  %v1554 = vrot.slane %v1529, %v1553
  %v1555 = vlaneseq
  %v1556 = vshrl.u32 %v1555, 7
  %v1557 = vsub.s32 6, %v1556
  %v1558 = vrot.slane %v1529, %v1557
  %v1694 = vunpack.c.l.b16 %v1401
  %v1695 = vunpack.c.h.b16 %v1401
  %v1696 = vunpack.c.l.b16 %v1402
  %v1697 = vunpack.c.h.b16 %v1402
  %v1698 = vunpack.c.l.b16 %v1403
  %v1699 = vunpack.c.h.b16 %v1403
  %v1700 = vunpack.c.l.b16 %v1404
  %v1701 = vunpack.c.l.b16 %v1405
  %v1702 = vunpack.c.h.b16 %v1405
  %v1703 = vunpack.c.l.b16 %v1406
  %v1704 = vunpack.c.h.b16 %v1406
  %v1705 = vunpack.c.l.b16 %v1407
  %v1706 = vunpack.c.h.b16 %v1407
  %v1707 = vunpack.c.l.b16 %v1408
  %v1708 = vunpack.c.l.b16 %v1409
  %v1709 = vunpack.c.h.b16 %v1409
  %v1710 = vunpack.c.l.b16 %v1410
  %v1711 = vunpack.c.h.b16 %v1410
  %v1712 = vunpack.c.l.b16 %v1411
  %v1713 = vunpack.c.h.b16 %v1411
  %v1714 = vunpack.c.l.b16 %v1412
  %v1715 = vunpack.c.l.b16 %v1413
  %v1716 = vunpack.c.h.b16 %v1413
  %v1717 = vunpack.c.l.b16 %v1414
  %v1718 = vunpack.c.h.b16 %v1414
  %v1719 = vunpack.c.l.b16 %v1415
  %v1720 = vunpack.c.h.b16 %v1415
  %v1721 = vunpack.c.l.b16 %v1416
  %v1722 = vunpack.c.l.b16 %v1417
  %v1723 = vunpack.c.h.b16 %v1417
  %v1724 = vunpack.c.l.b16 %v1418
  %v1725 = vunpack.c.h.b16 %v1418
  %v1726 = vunpack.c.l.b16 %v1419
  %v1727 = vunpack.c.h.b16 %v1419
  %v1728 = vunpack.c.l.b16 %v1420
  %v1729 = vunpack.c.l.b16 %v1421
  %v1730 = vunpack.c.h.b16 %v1421
  %v1731 = vunpack.c.l.b16 %v1422
  %v1732 = vunpack.c.h.b16 %v1422
  %v1733 = vunpack.c.l.b16 %v1423
  %v1734 = vunpack.c.h.b16 %v1423
  %v1735 = vunpack.c.l.b16 %v1424
  %v1736 = vunpack.c.l.b16 %v1425
  %v1737 = vunpack.c.h.b16 %v1425
  %v1738 = vunpack.c.l.b16 %v1426
  %v1739 = vunpack.c.h.b16 %v1426
  %v1740 = vunpack.c.l.b16 %v1427
  %v1741 = vunpack.c.h.b16 %v1427
  %v1742 = vunpack.c.l.b16 %v1428
  %v1743 = vunpack.c.l.b16 %v1429
  %v1744 = vunpack.c.h.b16 %v1429
  %v1745 = vunpack.c.l.b16 %v1430
  %v1746 = vunpack.c.h.b16 %v1430
  %v1747 = vunpack.c.l.b16 %v1431
  %v1748 = vunpack.c.h.b16 %v1431
  %v1749 = vunpack.c.l.b16 %v1432
  %v1750 = vunpack.c.l.b16 %v1433
  %v1751 = vunpack.c.h.b16 %v1433
  %v1752 = vunpack.c.l.b16 %v1434
  %v1753 = vunpack.c.h.b16 %v1434
  %v1754 = vunpack.c.l.b16 %v1435
  %v1755 = vunpack.c.h.b16 %v1435
  %v1756 = vunpack.c.l.b16 %v1436
  %v1757 = vunpack.c.l.b16 %v1437
  %v1758 = vunpack.c.h.b16 %v1437
  %v1759 = vunpack.c.l.b16 %v1438
  %v1760 = vunpack.c.h.b16 %v1438
  %v1761 = vunpack.c.l.b16 %v1439
  %v1762 = vunpack.c.h.b16 %v1439
  %v1763 = vunpack.c.l.b16 %v1440
  %v1764 = vunpack.c.l.b16 %v1441
  %v1765 = vunpack.c.h.b16 %v1441
  %v1766 = vunpack.c.l.b16 %v1442
  %v1767 = vunpack.c.h.b16 %v1442
  %v1768 = vunpack.c.l.b16 %v1443
  %v1769 = vunpack.c.h.b16 %v1443
  %v1770 = vunpack.c.l.b16 %v1444
  %v1771 = vunpack.c.l.b16 %v1445
  %v1772 = vunpack.c.h.b16 %v1445
  %v1773 = vunpack.c.l.b16 %v1446
  %v1774 = vunpack.c.h.b16 %v1446
  %v1775 = vunpack.c.l.b16 %v1447
  %v1776 = vunpack.c.h.b16 %v1447
  %v1777 = vunpack.c.l.b16 %v1448
  %v1778 = vunpack.c.l.b16 %v1449
  %v1779 = vunpack.c.h.b16 %v1449
  %v1780 = vunpack.c.l.b16 %v1450
  %v1781 = vunpack.c.h.b16 %v1450
  %v1782 = vunpack.c.l.b16 %v1451
  %v1783 = vunpack.c.h.b16 %v1451
  %v1784 = vunpack.c.l.b16 %v1452
  %v1785 = vunpack.c.l.b16 %v1453
  %v1786 = vunpack.c.h.b16 %v1453
  %v1787 = vunpack.c.l.b16 %v1454
  %v1788 = vunpack.c.h.b16 %v1454
  %v1789 = vunpack.c.l.b16 %v1455
  %v1790 = vunpack.c.h.b16 %v1455
  %v1791 = vunpack.c.l.b16 %v1456
  %v1792 = vunpack.c.l.b16 %v1457
  %v1793 = vunpack.c.h.b16 %v1457
  %v1794 = vunpack.c.l.b16 %v1458
  %v1795 = vunpack.c.h.b16 %v1458
  %v1796 = vunpack.c.l.b16 %v1459
  %v1797 = vunpack.c.h.b16 %v1459
  %v1798 = vunpack.c.l.b16 %v1460
  %v1799 = vunpack.c.l.b16 %v1461
  %v1800 = vunpack.c.h.b16 %v1461
  %v1801 = vunpack.c.l.b16 %v1462
  %v1802 = vunpack.c.h.b16 %v1462
  %v1803 = vunpack.c.l.b16 %v1463
  %v1804 = vunpack.c.h.b16 %v1463
  %v1805 = vunpack.c.l.b16 %v1464
  %v1806 = vunpack.c.l.b16 %v1465
  %v1807 = vunpack.c.h.b16 %v1465
  %v1808 = vunpack.c.l.b16 %v1466
  %v1809 = vunpack.c.h.b16 %v1466
  %v1810 = vunpack.c.l.b16 %v1467
  %v1811 = vunpack.c.h.b16 %v1467
  %v1812 = vunpack.c.l.b16 %v1468
  %v1813 = vunpack.c.l.b16 %v1469
  %v1814 = vunpack.c.h.b16 %v1469
  %v1815 = vunpack.c.l.b16 %v1470
  %v1816 = vunpack.c.h.b16 %v1470
  %v1817 = vunpack.c.l.b16 %v1471
  %v1818 = vunpack.c.h.b16 %v1471
  %v1819 = vunpack.c.l.b16 %v1472
  %v1820 = vunpack.c.l.b16 %v1473
  %v1821 = vunpack.c.h.b16 %v1473
  %v1822 = vunpack.c.l.b16 %v1474
  %v1823 = vunpack.c.h.b16 %v1474
  %v1824 = vunpack.c.l.b16 %v1475
  %v1825 = vunpack.c.h.b16 %v1475
  %v1826 = vunpack.c.l.b16 %v1476
  %v1827 = vunpack.c.l.b16 %v1477
  %v1828 = vunpack.c.h.b16 %v1477
  %v1829 = vunpack.c.l.b16 %v1478
  %v1830 = vunpack.c.h.b16 %v1478
  %v1831 = vunpack.c.l.b16 %v1479
  %v1832 = vunpack.c.h.b16 %v1479
  %v1833 = vunpack.c.l.b16 %v1480
  %v1834 = vunpack.c.l.b16 %v1481
  %v1835 = vunpack.c.h.b16 %v1481
  %v1836 = vunpack.c.l.b16 %v1482
  %v1837 = vunpack.c.h.b16 %v1482
  %v1838 = vunpack.c.l.b16 %v1483
  %v1839 = vunpack.c.h.b16 %v1483
  %v1840 = vunpack.c.l.b16 %v1484
  %v1841 = vunpack.c.l.b16 %v1485
  %v1842 = vunpack.c.h.b16 %v1485
  %v1843 = vunpack.c.l.b16 %v1486
  %v1844 = vunpack.c.h.b16 %v1486
  %v1845 = vunpack.c.l.b16 %v1487
  %v1846 = vunpack.c.h.b16 %v1487
  %v1847 = vunpack.c.l.b16 %v1488
  %v1848 = vunpack.c.l.b16 %v1489
  %v1849 = vunpack.c.h.b16 %v1489
  %v1850 = vunpack.c.l.b16 %v1490
  %v1851 = vunpack.c.h.b16 %v1490
  %v1852 = vunpack.c.l.b16 %v1491
  %v1853 = vunpack.c.h.b16 %v1491
  %v1854 = vunpack.c.l.b16 %v1492
  %v1855 = vunpack.c.l.b16 %v1493
  %v1856 = vunpack.c.h.b16 %v1493
  %v1857 = vunpack.c.l.b16 %v1494
  %v1858 = vunpack.c.h.b16 %v1494
  %v1859 = vunpack.c.l.b16 %v1495
  %v1860 = vunpack.c.h.b16 %v1495
  %v1861 = vunpack.c.l.b16 %v1496
  %v1862 = vunpack.c.l.b16 %v1497
  %v1863 = vunpack.c.h.b16 %v1497
  %v1864 = vunpack.c.l.b16 %v1498
  %v1865 = vunpack.c.h.b16 %v1498
  %v1866 = vunpack.c.l.b16 %v1499
  %v1867 = vunpack.c.h.b16 %v1499
  %v1868 = vunpack.c.l.b16 %v1500
  %v1869 = vunpack.c.l.b16 %v1501
  %v1870 = vunpack.c.h.b16 %v1501
  %v1871 = vunpack.c.l.b16 %v1502
  %v1872 = vunpack.c.h.b16 %v1502
  %v1873 = vunpack.c.l.b16 %v1503
  %v1874 = vunpack.c.h.b16 %v1503
  %v1875 = vunpack.c.l.b16 %v1504
  %v1876 = vunpack.c.l.b16 %v1505
  %v1877 = vunpack.c.h.b16 %v1505
  %v1878 = vunpack.c.l.b16 %v1506
  %v1879 = vunpack.c.h.b16 %v1506
  %v1880 = vunpack.c.l.b16 %v1507
  %v1881 = vunpack.c.h.b16 %v1507
  %v1882 = vunpack.c.l.b16 %v1508
  %v1883 = vunpack.c.l.b16 %v1509
  %v1884 = vunpack.c.h.b16 %v1509
  %v1885 = vunpack.c.l.b16 %v1510
  %v1886 = vunpack.c.h.b16 %v1510
  %v1887 = vunpack.c.l.b16 %v1511
  %v1888 = vunpack.c.h.b16 %v1511
  %v1889 = vunpack.c.l.b16 %v1512
  %v1890 = vunpack.c.l.b16 %v1513
  %v1891 = vunpack.c.h.b16 %v1513
  %v1892 = vunpack.c.l.b16 %v1514
  %v1893 = vunpack.c.h.b16 %v1514
  %v1894 = vunpack.c.l.b16 %v1515
  %v1895 = vunpack.c.h.b16 %v1515
  %v1896 = vunpack.c.l.b16 %v1516
  %v1897 = vunpack.c.l.b16 %v1517
  %v1898 = vunpack.c.h.b16 %v1517
  %v1899 = vunpack.c.l.b16 %v1518
  %v1900 = vunpack.c.h.b16 %v1518
  %v1901 = vunpack.c.l.b16 %v1519
  %v1902 = vunpack.c.h.b16 %v1519
  %v1903 = vunpack.c.l.b16 %v1520
  %v1904 = vunpack.c.l.b16 %v1521
  %v1905 = vunpack.c.h.b16 %v1521
  %v1906 = vunpack.c.l.b16 %v1522
  %v1907 = vunpack.c.h.b16 %v1522
  %v1908 = vunpack.c.l.b16 %v1523
  %v1909 = vunpack.c.h.b16 %v1523
  %v1910 = vunpack.c.l.b16 %v1524
  %v1911 = vunpack.c.l.b16 %v1525
  %v1912 = vunpack.c.h.b16 %v1525
  %v1913 = vunpack.c.l.b16 %v1526
  %v1914 = vunpack.c.h.b16 %v1526
  %v1915 = vunpack.c.l.b16 %v1527
  %v1916 = vunpack.c.h.b16 %v1527
  %v1917 = vunpack.c.l.b16 %v1528
  %v1918 = vpack.c.b16 %v1701, %v1694
  %v1919 = vpack.c.b16 %v1702, %v1695
  %v1920 = vpack.c.b16 %v1703, %v1696
  %v1921 = vpack.c.b16 %v1704, %v1697
  %v1922 = vpack.c.b16 %v1705, %v1698
  %v1923 = vpack.c.b16 %v1706, %v1699
  %v1924 = vpack.c.b16 %v1707, %v1700
  %v1925 = vpack.c.b16 %v1715, %v1708
  %v1926 = vpack.c.b16 %v1716, %v1709
  %v1927 = vpack.c.b16 %v1717, %v1710
  %v1928 = vpack.c.b16 %v1718, %v1711
  %v1929 = vpack.c.b16 %v1719, %v1712
  %v1930 = vpack.c.b16 %v1720, %v1713
  %v1931 = vpack.c.b16 %v1721, %v1714
  %v1932 = vpack.c.b16 %v1729, %v1722
  %v1933 = vpack.c.b16 %v1730, %v1723
  %v1934 = vpack.c.b16 %v1731, %v1724
  %v1935 = vpack.c.b16 %v1732, %v1725
  %v1936 = vpack.c.b16 %v1733, %v1726
  %v1937 = vpack.c.b16 %v1734, %v1727
  %v1938 = vpack.c.b16 %v1735, %v1728
  %v1939 = vpack.c.b16 %v1743, %v1736
  %v1940 = vpack.c.b16 %v1744, %v1737
  %v1941 = vpack.c.b16 %v1745, %v1738
  %v1942 = vpack.c.b16 %v1746, %v1739
  %v1943 = vpack.c.b16 %v1747, %v1740
  %v1944 = vpack.c.b16 %v1748, %v1741
  %v1945 = vpack.c.b16 %v1749, %v1742
  %v1946 = vpack.c.b16 %v1757, %v1750
  %v1947 = vpack.c.b16 %v1758, %v1751
  %v1948 = vpack.c.b16 %v1759, %v1752
  %v1949 = vpack.c.b16 %v1760, %v1753
  %v1950 = vpack.c.b16 %v1761, %v1754
  %v1951 = vpack.c.b16 %v1762, %v1755
  %v1952 = vpack.c.b16 %v1763, %v1756
  %v1953 = vpack.c.b16 %v1771, %v1764
  %v1954 = vpack.c.b16 %v1772, %v1765
  %v1955 = vpack.c.b16 %v1773, %v1766
  %v1956 = vpack.c.b16 %v1774, %v1767
  %v1957 = vpack.c.b16 %v1775, %v1768
  %v1958 = vpack.c.b16 %v1776, %v1769
  %v1959 = vpack.c.b16 %v1777, %v1770
  %v1960 = vpack.c.b16 %v1785, %v1778
  %v1961 = vpack.c.b16 %v1786, %v1779
  %v1962 = vpack.c.b16 %v1787, %v1780
  %v1963 = vpack.c.b16 %v1788, %v1781
  %v1964 = vpack.c.b16 %v1789, %v1782
  %v1965 = vpack.c.b16 %v1790, %v1783
  %v1966 = vpack.c.b16 %v1791, %v1784
  %v1967 = vpack.c.b16 %v1799, %v1792
  %v1968 = vpack.c.b16 %v1800, %v1793
  %v1969 = vpack.c.b16 %v1801, %v1794
  %v1970 = vpack.c.b16 %v1802, %v1795
  %v1971 = vpack.c.b16 %v1803, %v1796
  %v1972 = vpack.c.b16 %v1804, %v1797
  %v1973 = vpack.c.b16 %v1805, %v1798
  %v1974 = vpack.c.b16 %v1813, %v1806
  %v1975 = vpack.c.b16 %v1814, %v1807
  %v1976 = vpack.c.b16 %v1815, %v1808
  %v1977 = vpack.c.b16 %v1816, %v1809
  %v1978 = vpack.c.b16 %v1817, %v1810
  %v1979 = vpack.c.b16 %v1818, %v1811
  %v1980 = vpack.c.b16 %v1819, %v1812
  %v1981 = vpack.c.b16 %v1827, %v1820
  %v1982 = vpack.c.b16 %v1828, %v1821
  %v1983 = vpack.c.b16 %v1829, %v1822
  %v1984 = vpack.c.b16 %v1830, %v1823
  %v1985 = vpack.c.b16 %v1831, %v1824
  %v1986 = vpack.c.b16 %v1832, %v1825
  %v1987 = vpack.c.b16 %v1833, %v1826
  %v1988 = vpack.c.b16 %v1841, %v1834
  %v1989 = vpack.c.b16 %v1842, %v1835
  %v1990 = vpack.c.b16 %v1843, %v1836
  %v1991 = vpack.c.b16 %v1844, %v1837
  %v1992 = vpack.c.b16 %v1845, %v1838
  %v1993 = vpack.c.b16 %v1846, %v1839
  %v1994 = vpack.c.b16 %v1847, %v1840
  %v1995 = vpack.c.b16 %v1855, %v1848
  %v1996 = vpack.c.b16 %v1856, %v1849
  %v1997 = vpack.c.b16 %v1857, %v1850
  %v1998 = vpack.c.b16 %v1858, %v1851
  %v1999 = vpack.c.b16 %v1859, %v1852
  %v2000 = vpack.c.b16 %v1860, %v1853
  %v2001 = vpack.c.b16 %v1861, %v1854
  %v2002 = vpack.c.b16 %v1869, %v1862
  %v2003 = vpack.c.b16 %v1870, %v1863
  %v2004 = vpack.c.b16 %v1871, %v1864
  %v2005 = vpack.c.b16 %v1872, %v1865
  %v2006 = vpack.c.b16 %v1873, %v1866
  %v2007 = vpack.c.b16 %v1874, %v1867
  %v2008 = vpack.c.b16 %v1875, %v1868
  %v2009 = vpack.c.b16 %v1883, %v1876
  %v2010 = vpack.c.b16 %v1884, %v1877
  %v2011 = vpack.c.b16 %v1885, %v1878
  %v2012 = vpack.c.b16 %v1886, %v1879
  %v2013 = vpack.c.b16 %v1887, %v1880
  %v2014 = vpack.c.b16 %v1888, %v1881
  %v2015 = vpack.c.b16 %v1889, %v1882
  %v2016 = vpack.c.b16 %v1897, %v1890
  %v2017 = vpack.c.b16 %v1898, %v1891
  %v2018 = vpack.c.b16 %v1899, %v1892
  %v2019 = vpack.c.b16 %v1900, %v1893
  %v2020 = vpack.c.b16 %v1901, %v1894
  %v2021 = vpack.c.b16 %v1902, %v1895
  %v2022 = vpack.c.b16 %v1903, %v1896
  %v2023 = vpack.c.b16 %v1911, %v1904
  %v2024 = vpack.c.b16 %v1912, %v1905
  %v2025 = vpack.c.b16 %v1913, %v1906
  %v2026 = vpack.c.b16 %v1914, %v1907
  %v2027 = vpack.c.b16 %v1915, %v1908
  %v2028 = vpack.c.b16 %v1916, %v1909
  %v2029 = vpack.c.b16 %v1917, %v1910
  %2142 = vmatprep.subr.bf16.mxu0 %v1919
  %2143 = vmatpush1.bf16.msra.mxu0 %v1918
  %2144 = vmatprep.subr.bf16.mxu0 %v1926
  %2145 = vmatpush1.bf16.msra.mxu0 %v1925
  %2146 = vmatprep.subr.bf16.mxu0 %v1933
  %2147 = vmatpush1.bf16.msra.mxu0 %v1932
  %2148 = vmatprep.subr.bf16.mxu0 %v1940
  %2149 = vmatpush1.bf16.msra.mxu0 %v1939
  %2150 = vmatprep.subr.bf16.mxu0 %v1947
  %2151 = vmatpush1.bf16.msra.mxu0 %v1946
  %2152 = vmatprep.subr.bf16.mxu0 %v1954
  %2153 = vmatpush1.bf16.msra.mxu0 %v1953
  %2154 = vmatprep.subr.bf16.mxu0 %v1961
  %2155 = vmatpush1.bf16.msra.mxu0 %v1960
  %2156 = vmatprep.subr.bf16.mxu0 %v1968
  %2157 = vmatpush1.bf16.msra.mxu0 %v1967
  %2158 = vmatprep.subr.bf16.mxu0 %v1975
  %2159 = vmatpush1.bf16.msra.mxu0 %v1974
  %2160 = vmatprep.subr.bf16.mxu0 %v1982
  %2161 = vmatpush1.bf16.msra.mxu0 %v1981
  %2162 = vmatprep.subr.bf16.mxu0 %v1989
  %2163 = vmatpush1.bf16.msra.mxu0 %v1988
  %2164 = vmatprep.subr.bf16.mxu0 %v1996
  %2165 = vmatpush1.bf16.msra.mxu0 %v1995
  %2166 = vmatprep.subr.bf16.mxu0 %v2003
  %2167 = vmatpush1.bf16.msra.mxu0 %v2002
  %2168 = vmatprep.subr.bf16.mxu0 %v2010
  %2169 = vmatpush1.bf16.msra.mxu0 %v2009
  %2170 = vmatprep.subr.bf16.mxu0 %v2017
  %2171 = vmatpush1.bf16.msra.mxu0 %v2016
  %2172 = vmatprep.subr.bf16.mxu0 %v2024
  %2173 = vmatpush1.bf16.msra.mxu0 %v2023
  %2174 = vmatprep.mubr.bf16.mxu0 %v1400
  %2175 = vmatmul.mubr.bf16.gmra.mrb[0].mxu0 %v1399
  %v2176 = vpop.f32.mrb[0].mxu0
  %v2177 = vadd.f32 %v1534, %v2176
  %v2178 = vpop.f32.mrb[0].mxu0
  %v2179 = vadd.f32 %v1538, %v2178
  %v2180 = vpop.f32.mrb[0].mxu0
  %v2181 = vpop.f32.mrb[0].mxu0
  %2182 = vdwg.mxu0
  %2183 = vmatprep.subr.bf16.mxu0 %v1921
  %2184 = vmatpush1.bf16.msra.mxu0 %v1920
  %2185 = vmatprep.subr.bf16.mxu0 %v1928
  %2186 = vmatpush1.bf16.msra.mxu0 %v1927
  %2187 = vmatprep.subr.bf16.mxu0 %v1935
  %2188 = vmatpush1.bf16.msra.mxu0 %v1934
  %2189 = vmatprep.subr.bf16.mxu0 %v1942
  %2190 = vmatpush1.bf16.msra.mxu0 %v1941
  %2191 = vmatprep.subr.bf16.mxu0 %v1949
  %2192 = vmatpush1.bf16.msra.mxu0 %v1948
  %2193 = vmatprep.subr.bf16.mxu0 %v1956
  %2194 = vmatpush1.bf16.msra.mxu0 %v1955
  %2195 = vmatprep.subr.bf16.mxu0 %v1963
  %2196 = vmatpush1.bf16.msra.mxu0 %v1962
  %2197 = vmatprep.subr.bf16.mxu0 %v1970
  %2198 = vmatpush1.bf16.msra.mxu0 %v1969
  %2199 = vmatprep.subr.bf16.mxu0 %v1977
  %2200 = vmatpush1.bf16.msra.mxu0 %v1976
  %2201 = vmatprep.subr.bf16.mxu0 %v1984
  %2202 = vmatpush1.bf16.msra.mxu0 %v1983
  %2203 = vmatprep.subr.bf16.mxu0 %v1991
  %2204 = vmatpush1.bf16.msra.mxu0 %v1990
  %2205 = vmatprep.subr.bf16.mxu0 %v1998
  %2206 = vmatpush1.bf16.msra.mxu0 %v1997
  %2207 = vmatprep.subr.bf16.mxu0 %v2005
  %2208 = vmatpush1.bf16.msra.mxu0 %v2004
  %2209 = vmatprep.subr.bf16.mxu0 %v2012
  %2210 = vmatpush1.bf16.msra.mxu0 %v2011
  %2211 = vmatprep.subr.bf16.mxu0 %v2019
  %2212 = vmatpush1.bf16.msra.mxu0 %v2018
  %2213 = vmatprep.subr.bf16.mxu0 %v2026
  %2214 = vmatpush1.bf16.msra.mxu0 %v2025
  %2215 = vmatprep.mubr.bf16.mxu0 %v1400
  %2216 = vmatmul.mubr.bf16.gmra.mrb[0].mxu0 %v1399
  %v2217 = vpop.f32.mrb[0].mxu0
  %v2218 = vadd.f32 %v1542, %v2217
  %v2219 = vpop.f32.mrb[0].mxu0
  %v2220 = vadd.f32 %v1546, %v2219
  %v2221 = vpop.f32.mrb[0].mxu0
  %v2222 = vpop.f32.mrb[0].mxu0
  %2223 = vdwg.mxu0
  %2224 = vmatprep.subr.bf16.mxu0 %v1923
  %2225 = vmatpush1.bf16.msra.mxu0 %v1922
  %2226 = vmatprep.subr.bf16.mxu0 %v1930
  %2227 = vmatpush1.bf16.msra.mxu0 %v1929
  %2228 = vmatprep.subr.bf16.mxu0 %v1937
  %2229 = vmatpush1.bf16.msra.mxu0 %v1936
  %2230 = vmatprep.subr.bf16.mxu0 %v1944
  %2231 = vmatpush1.bf16.msra.mxu0 %v1943
  %2232 = vmatprep.subr.bf16.mxu0 %v1951
  %2233 = vmatpush1.bf16.msra.mxu0 %v1950
  %2234 = vmatprep.subr.bf16.mxu0 %v1958
  %2235 = vmatpush1.bf16.msra.mxu0 %v1957
  %2236 = vmatprep.subr.bf16.mxu0 %v1965
  %2237 = vmatpush1.bf16.msra.mxu0 %v1964
  %2238 = vmatprep.subr.bf16.mxu0 %v1972
  %2239 = vmatpush1.bf16.msra.mxu0 %v1971
  %2240 = vmatprep.subr.bf16.mxu0 %v1979
  %2241 = vmatpush1.bf16.msra.mxu0 %v1978
  %2242 = vmatprep.subr.bf16.mxu0 %v1986
  %2243 = vmatpush1.bf16.msra.mxu0 %v1985
  %2244 = vmatprep.subr.bf16.mxu0 %v1993
  %2245 = vmatpush1.bf16.msra.mxu0 %v1992
  %2246 = vmatprep.subr.bf16.mxu0 %v2000
  %2247 = vmatpush1.bf16.msra.mxu0 %v1999
  %2248 = vmatprep.subr.bf16.mxu0 %v2007
  %2249 = vmatpush1.bf16.msra.mxu0 %v2006
  %2250 = vmatprep.subr.bf16.mxu0 %v2014
  %2251 = vmatpush1.bf16.msra.mxu0 %v2013
  %2252 = vmatprep.subr.bf16.mxu0 %v2021
  %2253 = vmatpush1.bf16.msra.mxu0 %v2020
  %2254 = vmatprep.subr.bf16.mxu0 %v2028
  %2255 = vmatpush1.bf16.msra.mxu0 %v2027
  %2256 = vmatprep.mubr.bf16.mxu0 %v1400
  %2257 = vmatmul.mubr.bf16.gmra.mrb[0].mxu0 %v1399
  %v2258 = vpop.f32.mrb[0].mxu0
  %v2259 = vadd.f32 %v1550, %v2258
  %v2260 = vpop.f32.mrb[0].mxu0
  %v2261 = vadd.f32 %v1554, %v2260
  %v2262 = vpop.f32.mrb[0].mxu0
  %v2263 = vpop.f32.mrb[0].mxu0
  %2264 = vdwg.mxu0
  %2265 = vmatprep.subr.bf16.mxu0 0
  %2266 = vmatpush1.bf16.msra.mxu0 %v1924
  %2267 = vmatprep.subr.bf16.mxu0 0
  %2268 = vmatpush1.bf16.msra.mxu0 %v1931
  %2269 = vmatprep.subr.bf16.mxu0 0
  %2270 = vmatpush1.bf16.msra.mxu0 %v1938
  %2271 = vmatprep.subr.bf16.mxu0 0
  %2272 = vmatpush1.bf16.msra.mxu0 %v1945
  %2273 = vmatprep.subr.bf16.mxu0 0
  %2274 = vmatpush1.bf16.msra.mxu0 %v1952
  %2275 = vmatprep.subr.bf16.mxu0 0
  %2276 = vmatpush1.bf16.msra.mxu0 %v1959
  %2277 = vmatprep.subr.bf16.mxu0 0
  %2278 = vmatpush1.bf16.msra.mxu0 %v1966
  %2279 = vmatprep.subr.bf16.mxu0 0
  %2280 = vmatpush1.bf16.msra.mxu0 %v1973
  %2281 = vmatprep.subr.bf16.mxu0 0
  %2282 = vmatpush1.bf16.msra.mxu0 %v1980
  %2283 = vmatprep.subr.bf16.mxu0 0
  %2284 = vmatpush1.bf16.msra.mxu0 %v1987
  %2285 = vmatprep.subr.bf16.mxu0 0
  %2286 = vmatpush1.bf16.msra.mxu0 %v1994
  %2287 = vmatprep.subr.bf16.mxu0 0
  %2288 = vmatpush1.bf16.msra.mxu0 %v2001
  %2289 = vmatprep.subr.bf16.mxu0 0
  %2290 = vmatpush1.bf16.msra.mxu0 %v2008
  %2291 = vmatprep.subr.bf16.mxu0 0
  %2292 = vmatpush1.bf16.msra.mxu0 %v2015
  %2293 = vmatprep.subr.bf16.mxu0 0
  %2294 = vmatpush1.bf16.msra.mxu0 %v2022
  %2295 = vmatprep.subr.bf16.mxu0 0
  %2296 = vmatpush1.bf16.msra.mxu0 %v2029
  %2297 = vmatprep.mubr.bf16.mxu0 %v1400
  %2298 = vmatmul.mubr.bf16.gmra.mrb[0].mxu0 %v1399
  %v2299 = vpop.f32.mrb[0].mxu0
  %v2300 = vadd.f32 %v1558, %v2299
  %v2301 = vpop.f32.mrb[0].mxu0
  %v2302 = vpop.f32.mrb[0].mxu0
  %v2303 = vpop.f32.mrb[0].mxu0
  %2304 = vdwg.mxu0
  %v2305 = vsub.f32 0.0, %v2177
  %v2306 = vsub.f32 0.0, %v2179
  %v2307 = vsub.f32 0.0, %v2218
  %v2308 = vsub.f32 0.0, %v2220
  %v2309 = vsub.f32 0.0, %v2259
  %v2310 = vsub.f32 0.0, %v2261
  %v2311 = vsub.f32 0.0, %v2300
  %v2312 = vmul.f32 %v2305, 1.442695
  %v2313 = vpow.pop %v2312
  %v2314 = vmul.f32 %v2306, 1.442695
  %v2315 = vpow.pop %v2314
  %v2316 = vmul.f32 %v2307, 1.442695
  %v2317 = vpow.pop %v2316
  %v2318 = vmul.f32 %v2308, 1.442695
  %v2319 = vpow.pop %v2318
  %v2320 = vmul.f32 %v2309, 1.442695
  %v2321 = vpow.pop %v2320
  %v2322 = vmul.f32 %v2310, 1.442695
  %v2323 = vpow.pop %v2322
  %v2324 = vmul.f32 %v2311, 1.442695
  %v2325 = vpow.pop %v2324
  %v2326 = vadd.f32 %v2313, 1.0
  %v2327 = vadd.f32 %v2315, 1.0
  %v2328 = vadd.f32 %v2317, 1.0
  %v2329 = vadd.f32 %v2319, 1.0
  %v2330 = vadd.f32 %v2321, 1.0
  %v2331 = vadd.f32 %v2323, 1.0
  %v2332 = vadd.f32 %v2325, 1.0
  %v2333 = vrcp.pop %v2326
  %v2334 = vrcp.pop %v2327
  %v2335 = vrcp.pop %v2328
  %v2336 = vrcp.pop %v2329
  %v2337 = vrcp.pop %v2330
  %v2338 = vrcp.pop %v2331
  %v2339 = vrcp.pop %v2332
  %2340 = vst [vmem:[%s13] sm:$0xff] %v2333
  %2341 = vst [vmem:[%s13 + $0x8] sm:$0xff] %v2334
  %2342 = vst [vmem:[%s13 + $0x10] sm:$0xff] %v2335
  %2343 = vst [vmem:[%s13 + $0x18] sm:$0xff] %v2336
  %2344 = vst [vmem:[%s13 + $0x20] sm:$0xff] %v2337
  %2345 = vst [vmem:[%s13 + $0x28] sm:$0xff] %v2338
  %2346 = vst.msk [vmem:[%s13 + $0x30] sm:$0xff] %vm673, %v2339
  // Predicated region
  $region54: #{autoencoder_forward.1} parent=0 // pred_check
    _
  $region55: #{autoencoder_forward.1} parent=0 // pred_check_branch
    %2348 = sbr.rel (0) target = $region57
  $region56: #{autoencoder_forward.1} parent=0 // pred_region
    _
  $region57: #{autoencoder_forward.1} parent=0 // pred_fallthru
    _
  // Predicated region
  $region58: #{autoencoder_forward.1} parent=0 // pred_check
    _
  $region59: #{autoencoder_forward.1} parent=0 // pred_check_branch
    %2350 = sbr.rel (0) target = $region61
  $region60: #{autoencoder_forward.1} parent=0 // pred_region
    _
  $region61: #{autoencoder_forward.1} parent=0 // pred_fallthru
    _

</llo_original>
